<compile_context>
chip_gen: v7x
topology: tpu7x:2x2x1
jax: 0.10.0
libtpu: 0.0.40
codegen_flags: <defaults>
</compile_context>

<pallas_src>
import functools
import math

import jax
import jax.numpy as jnp
from jax import lax
from jax.experimental import pallas as pl
from jax.experimental.pallas import tpu as pltpu


_ISSUE_UNROLL = 8  # rows per unrolled DMA-issue group (tok_tile is a multiple of 8)


def _round_up(a: int, b: int) -> int:
    return ((a + b - 1) // b) * b


def _embedding_kernel(tok_tile, scale, ids_ref, table_ref, o_ref, buf, sem):
    """Gather `tok_tile` embedding rows from HBM and scale by sqrt(d_model).

    ids_ref   : (n_pad,) int32 token ids in SMEM (scalar-prefetched).
    table_ref : (vocab, d) embedding table, left in HBM (memory_space=pl.ANY).
    o_ref     : (tok_tile, d) output tile in VMEM.
    buf       : (2*tok_tile, d) VMEM gather buffer (double-buffered by slot).
    sem       : (2,) DMA semaphores, one per slot.
    """
    i = pl.program_id(0)
    n_tiles = pl.num_programs(0)
    slot = i % 2
    next_slot = 1 - slot

    def issue_tile(tile_idx, dst_slot):
        base = tile_idx * tok_tile
        dst_base = dst_slot * tok_tile

        def group(g, carry):
            g0 = pl.multiple_of(g * _ISSUE_UNROLL, _ISSUE_UNROLL)
            # Static inner unroll: 8 descriptor pushes per loop iteration.
            for u in range(_ISSUE_UNROLL):
                t_idx = g0 + u
                row = ids_ref[base + t_idx]
                pltpu.make_async_copy(
                    table_ref.at[pl.ds(row, 1), :],
                    buf.at[pl.ds(dst_base + t_idx, 1), :],
                    sem.at[dst_slot],
                ).start()
            return carry

        lax.fori_loop(0, tok_tile // _ISSUE_UNROLL, group, 0)

    # Prologue: the first step issues its own tile's gather.
    @pl.when(i == 0)
    def _():
        issue_tile(0, slot)

    # Prefetch the NEXT tile into the other slot before waiting on this one.
    @pl.when(i + 1 < n_tiles)
    def _():
        issue_tile(i + 1, next_slot)

    off_cur = pl.multiple_of(slot * tok_tile, 8)
    off_nxt = pl.multiple_of(next_slot * tok_tile, 8)

    # ONE aggregated wait: every row copy of this tile signaled sem[slot] with
    # its byte count; this descriptor covers tok_tile*d*itemsize bytes, so a
    # single .wait() retires all of them.  (src is a shape-matched dummy; the
    # wait only uses the destination size.)
    pltpu.make_async_copy(
        buf.at[pl.ds(off_nxt, tok_tile), :],
        buf.at[pl.ds(off_cur, tok_tile), :],
        sem.at[slot],
    ).wait()

    vals = buf[pl.ds(off_cur, tok_tile), :]
    # Scale in the table's native dtype (bf16 stays bf16 on v6e/v7x).
    o_ref[...] = (vals * scale).astype(o_ref.dtype)


def input_embedding(ids, table, *, tok_tile: int = 1024):
    """ids: integer array (...,); table: (vocab, d). Returns table[ids] * sqrt(d)."""
    orig_shape = tuple(ids.shape)
    vocab, d = table.shape

    n = math.prod(orig_shape) if orig_shape else 1
    if n == 0:  # degenerate case: nothing to gather
        return jnp.zeros(orig_shape + (d,), dtype=table.dtype)

    scale = float(math.sqrt(d))
    itemsize = jnp.dtype(table.dtype).itemsize

    # Tile sizing from a VMEM budget: gather double-buffer (2*t*d) plus Pallas's
    # own output double-buffer (2*t*d) must stay under ~24 MiB -> safe on v7x.
    buf_budget = 24 * 1024 * 1024
    t_cap = max(8, (buf_budget // (4 * d * itemsize)) // 8 * 8)
    t = max(8, min(_round_up(tok_tile, 8), t_cap, _round_up(n, 8)))

    n_pad = _round_up(n, t)
    grid = (n_pad // t,)

    # Clip keeps out-of-range ids from issuing OOB DMAs (PyTorch would raise on
    # invalid ids instead; numeric behavior for valid ids is identical).
    ids_flat = jnp.clip(ids.reshape(n).astype(jnp.int32), 0, vocab - 1)
    if n_pad != n:
        ids_flat = jnp.pad(ids_flat, (0, n_pad - n))  # pad with row 0 (discarded)

    # VMEM limit derived from actual usage, capped at 40 MiB (v7x has 64 MiB).
    vmem_limit = int(min(40 * 1024 * 1024, 4 * t * d * itemsize + (8 << 20)))

    out = pl.pallas_call(
        functools.partial(_embedding_kernel, t, scale),
        out_shape=jax.ShapeDtypeStruct((n_pad, d), table.dtype),
        grid_spec=pltpu.PrefetchScalarGridSpec(
            num_scalar_prefetch=1,                          # token ids -> SMEM
            grid=grid,
            in_specs=[pl.BlockSpec(memory_space=pl.ANY)],   # table stays in HBM
            out_specs=pl.BlockSpec((t, d), lambda i, _ids: (i, 0)),
            scratch_shapes=[
                pltpu.VMEM((2 * t, d), table.dtype),        # double-buffered gather buf
                pltpu.SemaphoreType.DMA((2,)),              # one DMA sem per slot
            ],
        ),
        compiler_params=pltpu.CompilerParams(
            # Cross-step double buffering makes steps order-dependent.
            dimension_semantics=("arbitrary",),
            vmem_limit_bytes=vmem_limit,
        ),
        cost_estimate=pl.CostEstimate(
            flops=int(n_pad * d),
            transcendentals=0,
            bytes_accessed=int(2 * n_pad * d * itemsize + n_pad * 4),
        ),
    )(ids_flat, table)

    return out[:n].reshape(orig_shape + (d,))


def _reference(ids, table):
    return jnp.take(table, ids, axis=0) * jnp.float32(math.sqrt(table.shape[1]))


if __name__ == "__main__":
    key = jax.random.PRNGKey(0)
    k_ids, k_tab = jax.random.split(key)

    batch, seq = 2, 8
    vocab_size, model_dimension = 64, 32

    ids = jax.random.randint(k_ids, (batch, seq), 0, vocab_size, dtype=jnp.int32)
    # nn.Embedding default init: weight ~ N(0, 1)
    table = jax.random.normal(k_tab, (vocab_size, model_dimension), dtype=jnp.float32)

    out = input_embedding(ids, table)
    out = jax.block_until_ready(out)

    ref = _reference(ids, table)
    assert out.shape == (batch, seq, model_dimension)
    assert out.dtype == table.dtype
    assert jnp.allclose(out, ref, atol=1e-5, rtol=1e-5), "mismatch vs reference"

    print("KERNEL_OK")
</pallas_src>

<mosaic_0001>
module attributes {stable_mosaic.version = 11 : i64} {
  func.func @_embedding_kernel(%arg0: i32, %arg1: memref<16xi32, #tpu.memory_space<smem>>, %arg2: memref<64x32xf32, #tpu.memory_space<any>>, %arg3: memref<16x32xf32, #tpu.memory_space<vmem>>, %arg4: memref<32x32xf32, #tpu.memory_space<vmem>>, %arg5: memref<2x!tpu.dma_semaphore, #tpu.memory_space<semaphore_mem>>) attributes {dimension_semantics = [#tpu.dimension_semantics<arbitrary>], iteration_bounds = array<i64: 1>, scalar_prefetch = 1 : i64, scratch_operands = 2 : i64, tpu.core_type = #tpu.core_type<tc>, window_params = [{}, {transform_indices = @transform_1, window_bounds = array<i64: 16, 32>}]} {
    %c2_i32 = arith.constant 2 : i32
    %c0_i32 = arith.constant 0 : i32
    %0 = arith.cmpi eq, %c2_i32, %c0_i32 : i32
    %c1_i32 = arith.constant 1 : i32
    %1 = arith.select %0, %c1_i32, %c2_i32 : i32
    %2 = arith.remsi %arg0, %1 : i32
    %c0_i32_0 = arith.constant 0 : i32
    %3 = arith.cmpi ne, %2, %c0_i32_0 : i32
    %c0_i32_1 = arith.constant 0 : i32
    %4 = arith.cmpi slt, %2, %c0_i32_1 : i32
    %c0_i32_2 = arith.constant 0 : i32
    %5 = arith.cmpi slt, %1, %c0_i32_2 : i32
    %6 = arith.xori %4, %5 : i1
    %7 = arith.andi %6, %3 : i1
    %8 = arith.addi %2, %1 : i32
    %9 = arith.select %7, %8, %2 : i32
    %c1_i32_3 = arith.constant 1 : i32
    %10 = arith.subi %c1_i32_3, %9 : i32
    %c0_i32_4 = arith.constant 0 : i32
    %11 = arith.cmpi eq, %arg0, %c0_i32_4 : i32
    %12 = arith.extui %11 : i1 to i32
    %c0_i32_5 = arith.constant 0 : i32
    %13 = arith.cmpi ne, %12, %c0_i32_5 : i32
    scf.if %13 {
      %c16_i32_14 = arith.constant 16 : i32
      %31 = arith.muli %9, %c16_i32_14 : i32
      %c0_i32_15 = arith.constant 0 : i32
      %c2_i32_16 = arith.constant 2 : i32
      %32 = arith.addi %c0_i32_15, %c2_i32_16 : i32
      %c1_i32_17 = arith.constant 1 : i32
      scf.for %arg6 = %c0_i32_15 to %32 step %c1_i32_17  : i32 {
        %c8_i32 = arith.constant 8 : i32
        %33 = arith.muli %arg6, %c8_i32 : i32
        %34 = tpu.assume_multiple %33, 8 : i32
        %c0_i32_19 = arith.constant 0 : i32
        %35 = arith.addi %34, %c0_i32_19 : i32
        %c0_i32_20 = arith.constant 0 : i32
        %36 = arith.addi %c0_i32_20, %35 : i32
        %37 = arith.index_cast %36 : i32 to index
        %38 = memref.load %arg1[%37] : memref<16xi32, #tpu.memory_space<smem>>
        %39 = arith.addi %31, %35 : i32
        %c0_i32_21 = arith.constant 0 : i32
        %40 = tpu.memref_slice %arg2[%38, %c0_i32_21] : memref<64x32xf32, #tpu.memory_space<any>> -> memref<1x32xf32, #tpu.memory_space<any>>
        %c0_i32_22 = arith.constant 0 : i32
        %41 = tpu.memref_slice %arg4[%39, %c0_i32_22] : memref<32x32xf32, #tpu.memory_space<vmem>> -> memref<1x32xf32, #tpu.memory_space<vmem>>
        %42 = tpu.memref_slice %arg5[%9] : memref<2x!tpu.dma_semaphore, #tpu.memory_space<semaphore_mem>> -> memref<1x!tpu.dma_semaphore, #tpu.memory_space<semaphore_mem>>
        %43 = tpu.memref_squeeze %42 : memref<1x!tpu.dma_semaphore, #tpu.memory_space<semaphore_mem>> -> memref<!tpu.dma_semaphore, #tpu.memory_space<semaphore_mem>>
        tpu.enqueue_dma source(%40 : memref<1x32xf32, #tpu.memory_space<any>>) target(%41 : memref<1x32xf32, #tpu.memory_space<vmem>>) target_semaphore(%43 : memref<!tpu.dma_semaphore, #tpu.memory_space<semaphore_mem>>)
        %c1_i32_23 = arith.constant 1 : i32
        %44 = arith.addi %34, %c1_i32_23 : i32
        %c0_i32_24 = arith.constant 0 : i32
        %45 = arith.addi %c0_i32_24, %44 : i32
        %46 = arith.index_cast %45 : i32 to index
        %47 = memref.load %arg1[%46] : memref<16xi32, #tpu.memory_space<smem>>
        %48 = arith.addi %31, %44 : i32
        %c0_i32_25 = arith.constant 0 : i32
        %49 = tpu.memref_slice %arg2[%47, %c0_i32_25] : memref<64x32xf32, #tpu.memory_space<any>> -> memref<1x32xf32, #tpu.memory_space<any>>
        %c0_i32_26 = arith.constant 0 : i32
        %50 = tpu.memref_slice %arg4[%48, %c0_i32_26] : memref<32x32xf32, #tpu.memory_space<vmem>> -> memref<1x32xf32, #tpu.memory_space<vmem>>
        %51 = tpu.memref_slice %arg5[%9] : memref<2x!tpu.dma_semaphore, #tpu.memory_space<semaphore_mem>> -> memref<1x!tpu.dma_semaphore, #tpu.memory_space<semaphore_mem>>
        %52 = tpu.memref_squeeze %51 : memref<1x!tpu.dma_semaphore, #tpu.memory_space<semaphore_mem>> -> memref<!tpu.dma_semaphore, #tpu.memory_space<semaphore_mem>>
        tpu.enqueue_dma source(%49 : memref<1x32xf32, #tpu.memory_space<any>>) target(%50 : memref<1x32xf32, #tpu.memory_space<vmem>>) target_semaphore(%52 : memref<!tpu.dma_semaphore, #tpu.memory_space<semaphore_mem>>)
        %c2_i32_27 = arith.constant 2 : i32
        %53 = arith.addi %34, %c2_i32_27 : i32
        %c0_i32_28 = arith.constant 0 : i32
        %54 = arith.addi %c0_i32_28, %53 : i32
        %55 = arith.index_cast %54 : i32 to index
        %56 = memref.load %arg1[%55] : memref<16xi32, #tpu.memory_space<smem>>
        %57 = arith.addi %31, %53 : i32
        %c0_i32_29 = arith.constant 0 : i32
        %58 = tpu.memref_slice %arg2[%56, %c0_i32_29] : memref<64x32xf32, #tpu.memory_space<any>> -> memref<1x32xf32, #tpu.memory_space<any>>
        %c0_i32_30 = arith.constant 0 : i32
        %59 = tpu.memref_slice %arg4[%57, %c0_i32_30] : memref<32x32xf32, #tpu.memory_space<vmem>> -> memref<1x32xf32, #tpu.memory_space<vmem>>
        %60 = tpu.memref_slice %arg5[%9] : memref<2x!tpu.dma_semaphore, #tpu.memory_space<semaphore_mem>> -> memref<1x!tpu.dma_semaphore, #tpu.memory_space<semaphore_mem>>
        %61 = tpu.memref_squeeze %60 : memref<1x!tpu.dma_semaphore, #tpu.memory_space<semaphore_mem>> -> memref<!tpu.dma_semaphore, #tpu.memory_space<semaphore_mem>>
        tpu.enqueue_dma source(%58 : memref<1x32xf32, #tpu.memory_space<any>>) target(%59 : memref<1x32xf32, #tpu.memory_space<vmem>>) target_semaphore(%61 : memref<!tpu.dma_semaphore, #tpu.memory_space<semaphore_mem>>)
        %c3_i32 = arith.constant 3 : i32
        %62 = arith.addi %34, %c3_i32 : i32
        %c0_i32_31 = arith.constant 0 : i32
        %63 = arith.addi %c0_i32_31, %62 : i32
        %64 = arith.index_cast %63 : i32 to index
        %65 = memref.load %arg1[%64] : memref<16xi32, #tpu.memory_space<smem>>
        %66 = arith.addi %31, %62 : i32
        %c0_i32_32 = arith.constant 0 : i32
        %67 = tpu.memref_slice %arg2[%65, %c0_i32_32] : memref<64x32xf32, #tpu.memory_space<any>> -> memref<1x32xf32, #tpu.memory_space<any>>
        %c0_i32_33 = arith.constant 0 : i32
        %68 = tpu.memref_slice %arg4[%66, %c0_i32_33] : memref<32x32xf32, #tpu.memory_space<vmem>> -> memref<1x32xf32, #tpu.memory_space<vmem>>
        %69 = tpu.memref_slice %arg5[%9] : memref<2x!tpu.dma_semaphore, #tpu.memory_space<semaphore_mem>> -> memref<1x!tpu.dma_semaphore, #tpu.memory_space<semaphore_mem>>
        %70 = tpu.memref_squeeze %69 : memref<1x!tpu.dma_semaphore, #tpu.memory_space<semaphore_mem>> -> memref<!tpu.dma_semaphore, #tpu.memory_space<semaphore_mem>>
        tpu.enqueue_dma source(%67 : memref<1x32xf32, #tpu.memory_space<any>>) target(%68 : memref<1x32xf32, #tpu.memory_space<vmem>>) target_semaphore(%70 : memref<!tpu.dma_semaphore, #tpu.memory_space<semaphore_mem>>)
        %c4_i32 = arith.constant 4 : i32
        %71 = arith.addi %34, %c4_i32 : i32
        %c0_i32_34 = arith.constant 0 : i32
        %72 = arith.addi %c0_i32_34, %71 : i32
        %73 = arith.index_cast %72 : i32 to index
        %74 = memref.load %arg1[%73] : memref<16xi32, #tpu.memory_space<smem>>
        %75 = arith.addi %31, %71 : i32
        %c0_i32_35 = arith.constant 0 : i32
        %76 = tpu.memref_slice %arg2[%74, %c0_i32_35] : memref<64x32xf32, #tpu.memory_space<any>> -> memref<1x32xf32, #tpu.memory_space<any>>
        %c0_i32_36 = arith.constant 0 : i32
        %77 = tpu.memref_slice %arg4[%75, %c0_i32_36] : memref<32x32xf32, #tpu.memory_space<vmem>> -> memref<1x32xf32, #tpu.memory_space<vmem>>
        %78 = tpu.memref_slice %arg5[%9] : memref<2x!tpu.dma_semaphore, #tpu.memory_space<semaphore_mem>> -> memref<1x!tpu.dma_semaphore, #tpu.memory_space<semaphore_mem>>
        %79 = tpu.memref_squeeze %78 : memref<1x!tpu.dma_semaphore, #tpu.memory_space<semaphore_mem>> -> memref<!tpu.dma_semaphore, #tpu.memory_space<semaphore_mem>>
        tpu.enqueue_dma source(%76 : memref<1x32xf32, #tpu.memory_space<any>>) target(%77 : memref<1x32xf32, #tpu.memory_space<vmem>>) target_semaphore(%79 : memref<!tpu.dma_semaphore, #tpu.memory_space<semaphore_mem>>)
        %c5_i32 = arith.constant 5 : i32
        %80 = arith.addi %34, %c5_i32 : i32
        %c0_i32_37 = arith.constant 0 : i32
        %81 = arith.addi %c0_i32_37, %80 : i32
        %82 = arith.index_cast %81 : i32 to index
        %83 = memref.load %arg1[%82] : memref<16xi32, #tpu.memory_space<smem>>
        %84 = arith.addi %31, %80 : i32
        %c0_i32_38 = arith.constant 0 : i32
        %85 = tpu.memref_slice %arg2[%83, %c0_i32_38] : memref<64x32xf32, #tpu.memory_space<any>> -> memref<1x32xf32, #tpu.memory_space<any>>
        %c0_i32_39 = arith.constant 0 : i32
        %86 = tpu.memref_slice %arg4[%84, %c0_i32_39] : memref<32x32xf32, #tpu.memory_space<vmem>> -> memref<1x32xf32, #tpu.memory_space<vmem>>
        %87 = tpu.memref_slice %arg5[%9] : memref<2x!tpu.dma_semaphore, #tpu.memory_space<semaphore_mem>> -> memref<1x!tpu.dma_semaphore, #tpu.memory_space<semaphore_mem>>
        %88 = tpu.memref_squeeze %87 : memref<1x!tpu.dma_semaphore, #tpu.memory_space<semaphore_mem>> -> memref<!tpu.dma_semaphore, #tpu.memory_space<semaphore_mem>>
        tpu.enqueue_dma source(%85 : memref<1x32xf32, #tpu.memory_space<any>>) target(%86 : memref<1x32xf32, #tpu.memory_space<vmem>>) target_semaphore(%88 : memref<!tpu.dma_semaphore, #tpu.memory_space<semaphore_mem>>)
        %c6_i32 = arith.constant 6 : i32
        %89 = arith.addi %34, %c6_i32 : i32
        %c0_i32_40 = arith.constant 0 : i32
        %90 = arith.addi %c0_i32_40, %89 : i32
        %91 = arith.index_cast %90 : i32 to index
        %92 = memref.load %arg1[%91] : memref<16xi32, #tpu.memory_space<smem>>
        %93 = arith.addi %31, %89 : i32
        %c0_i32_41 = arith.constant 0 : i32
        %94 = tpu.memref_slice %arg2[%92, %c0_i32_41] : memref<64x32xf32, #tpu.memory_space<any>> -> memref<1x32xf32, #tpu.memory_space<any>>
        %c0_i32_42 = arith.constant 0 : i32
        %95 = tpu.memref_slice %arg4[%93, %c0_i32_42] : memref<32x32xf32, #tpu.memory_space<vmem>> -> memref<1x32xf32, #tpu.memory_space<vmem>>
        %96 = tpu.memref_slice %arg5[%9] : memref<2x!tpu.dma_semaphore, #tpu.memory_space<semaphore_mem>> -> memref<1x!tpu.dma_semaphore, #tpu.memory_space<semaphore_mem>>
        %97 = tpu.memref_squeeze %96 : memref<1x!tpu.dma_semaphore, #tpu.memory_space<semaphore_mem>> -> memref<!tpu.dma_semaphore, #tpu.memory_space<semaphore_mem>>
        tpu.enqueue_dma source(%94 : memref<1x32xf32, #tpu.memory_space<any>>) target(%95 : memref<1x32xf32, #tpu.memory_space<vmem>>) target_semaphore(%97 : memref<!tpu.dma_semaphore, #tpu.memory_space<semaphore_mem>>)
        %c7_i32 = arith.constant 7 : i32
        %98 = arith.addi %34, %c7_i32 : i32
        %c0_i32_43 = arith.constant 0 : i32
        %99 = arith.addi %c0_i32_43, %98 : i32
        %100 = arith.index_cast %99 : i32 to index
        %101 = memref.load %arg1[%100] : memref<16xi32, #tpu.memory_space<smem>>
        %102 = arith.addi %31, %98 : i32
        %c0_i32_44 = arith.constant 0 : i32
        %103 = tpu.memref_slice %arg2[%101, %c0_i32_44] : memref<64x32xf32, #tpu.memory_space<any>> -> memref<1x32xf32, #tpu.memory_space<any>>
        %c0_i32_45 = arith.constant 0 : i32
        %104 = tpu.memref_slice %arg4[%102, %c0_i32_45] : memref<32x32xf32, #tpu.memory_space<vmem>> -> memref<1x32xf32, #tpu.memory_space<vmem>>
        %105 = tpu.memref_slice %arg5[%9] : memref<2x!tpu.dma_semaphore, #tpu.memory_space<semaphore_mem>> -> memref<1x!tpu.dma_semaphore, #tpu.memory_space<semaphore_mem>>
        %106 = tpu.memref_squeeze %105 : memref<1x!tpu.dma_semaphore, #tpu.memory_space<semaphore_mem>> -> memref<!tpu.dma_semaphore, #tpu.memory_space<semaphore_mem>>
        tpu.enqueue_dma source(%103 : memref<1x32xf32, #tpu.memory_space<any>>) target(%104 : memref<1x32xf32, #tpu.memory_space<vmem>>) target_semaphore(%106 : memref<!tpu.dma_semaphore, #tpu.memory_space<semaphore_mem>>)
      }
      %c2_i32_18 = arith.constant 2 : i32
    } else {
    }
    %c1_i32_6 = arith.constant 1 : i32
    %14 = arith.addi %arg0, %c1_i32_6 : i32
    %c1_i32_7 = arith.constant 1 : i32
    %15 = arith.cmpi slt, %14, %c1_i32_7 : i32
    %16 = arith.extui %15 : i1 to i32
    %c0_i32_8 = arith.constant 0 : i32
    %17 = arith.cmpi ne, %16, %c0_i32_8 : i32
    scf.if %17 {
      %c1_i32_14 = arith.constant 1 : i32
      %31 = arith.addi %arg0, %c1_i32_14 : i32
      %c16_i32_15 = arith.constant 16 : i32
      %32 = arith.muli %31, %c16_i32_15 : i32
      %c16_i32_16 = arith.constant 16 : i32
      %33 = arith.muli %10, %c16_i32_16 : i32
      %c0_i32_17 = arith.constant 0 : i32
      %c2_i32_18 = arith.constant 2 : i32
      %34 = arith.addi %c0_i32_17, %c2_i32_18 : i32
      %c1_i32_19 = arith.constant 1 : i32
      scf.for %arg6 = %c0_i32_17 to %34 step %c1_i32_19  : i32 {
        %c8_i32 = arith.constant 8 : i32
        %35 = arith.muli %arg6, %c8_i32 : i32
        %36 = tpu.assume_multiple %35, 8 : i32
        %c0_i32_21 = arith.constant 0 : i32
        %37 = arith.addi %36, %c0_i32_21 : i32
        %38 = arith.addi %32, %37 : i32
        %39 = arith.index_cast %38 : i32 to index
        %40 = memref.load %arg1[%39] : memref<16xi32, #tpu.memory_space<smem>>
        %41 = arith.addi %33, %37 : i32
        %c0_i32_22 = arith.constant 0 : i32
        %42 = tpu.memref_slice %arg2[%40, %c0_i32_22] : memref<64x32xf32, #tpu.memory_space<any>> -> memref<1x32xf32, #tpu.memory_space<any>>
        %c0_i32_23 = arith.constant 0 : i32
        %43 = tpu.memref_slice %arg4[%41, %c0_i32_23] : memref<32x32xf32, #tpu.memory_space<vmem>> -> memref<1x32xf32, #tpu.memory_space<vmem>>
        %44 = tpu.memref_slice %arg5[%10] : memref<2x!tpu.dma_semaphore, #tpu.memory_space<semaphore_mem>> -> memref<1x!tpu.dma_semaphore, #tpu.memory_space<semaphore_mem>>
        %45 = tpu.memref_squeeze %44 : memref<1x!tpu.dma_semaphore, #tpu.memory_space<semaphore_mem>> -> memref<!tpu.dma_semaphore, #tpu.memory_space<semaphore_mem>>
        tpu.enqueue_dma source(%42 : memref<1x32xf32, #tpu.memory_space<any>>) target(%43 : memref<1x32xf32, #tpu.memory_space<vmem>>) target_semaphore(%45 : memref<!tpu.dma_semaphore, #tpu.memory_space<semaphore_mem>>)
        %c1_i32_24 = arith.constant 1 : i32
        %46 = arith.addi %36, %c1_i32_24 : i32
        %47 = arith.addi %32, %46 : i32
        %48 = arith.index_cast %47 : i32 to index
        %49 = memref.load %arg1[%48] : memref<16xi32, #tpu.memory_space<smem>>
        %50 = arith.addi %33, %46 : i32
        %c0_i32_25 = arith.constant 0 : i32
        %51 = tpu.memref_slice %arg2[%49, %c0_i32_25] : memref<64x32xf32, #tpu.memory_space<any>> -> memref<1x32xf32, #tpu.memory_space<any>>
        %c0_i32_26 = arith.constant 0 : i32
        %52 = tpu.memref_slice %arg4[%50, %c0_i32_26] : memref<32x32xf32, #tpu.memory_space<vmem>> -> memref<1x32xf32, #tpu.memory_space<vmem>>
        %53 = tpu.memref_slice %arg5[%10] : memref<2x!tpu.dma_semaphore, #tpu.memory_space<semaphore_mem>> -> memref<1x!tpu.dma_semaphore, #tpu.memory_space<semaphore_mem>>
        %54 = tpu.memref_squeeze %53 : memref<1x!tpu.dma_semaphore, #tpu.memory_space<semaphore_mem>> -> memref<!tpu.dma_semaphore, #tpu.memory_space<semaphore_mem>>
        tpu.enqueue_dma source(%51 : memref<1x32xf32, #tpu.memory_space<any>>) target(%52 : memref<1x32xf32, #tpu.memory_space<vmem>>) target_semaphore(%54 : memref<!tpu.dma_semaphore, #tpu.memory_space<semaphore_mem>>)
        %c2_i32_27 = arith.constant 2 : i32
        %55 = arith.addi %36, %c2_i32_27 : i32
        %56 = arith.addi %32, %55 : i32
        %57 = arith.index_cast %56 : i32 to index
        %58 = memref.load %arg1[%57] : memref<16xi32, #tpu.memory_space<smem>>
        %59 = arith.addi %33, %55 : i32
        %c0_i32_28 = arith.constant 0 : i32
        %60 = tpu.memref_slice %arg2[%58, %c0_i32_28] : memref<64x32xf32, #tpu.memory_space<any>> -> memref<1x32xf32, #tpu.memory_space<any>>
        %c0_i32_29 = arith.constant 0 : i32
        %61 = tpu.memref_slice %arg4[%59, %c0_i32_29] : memref<32x32xf32, #tpu.memory_space<vmem>> -> memref<1x32xf32, #tpu.memory_space<vmem>>
        %62 = tpu.memref_slice %arg5[%10] : memref<2x!tpu.dma_semaphore, #tpu.memory_space<semaphore_mem>> -> memref<1x!tpu.dma_semaphore, #tpu.memory_space<semaphore_mem>>
        %63 = tpu.memref_squeeze %62 : memref<1x!tpu.dma_semaphore, #tpu.memory_space<semaphore_mem>> -> memref<!tpu.dma_semaphore, #tpu.memory_space<semaphore_mem>>
        tpu.enqueue_dma source(%60 : memref<1x32xf32, #tpu.memory_space<any>>) target(%61 : memref<1x32xf32, #tpu.memory_space<vmem>>) target_semaphore(%63 : memref<!tpu.dma_semaphore, #tpu.memory_space<semaphore_mem>>)
        %c3_i32 = arith.constant 3 : i32
        %64 = arith.addi %36, %c3_i32 : i32
        %65 = arith.addi %32, %64 : i32
        %66 = arith.index_cast %65 : i32 to index
        %67 = memref.load %arg1[%66] : memref<16xi32, #tpu.memory_space<smem>>
        %68 = arith.addi %33, %64 : i32
        %c0_i32_30 = arith.constant 0 : i32
        %69 = tpu.memref_slice %arg2[%67, %c0_i32_30] : memref<64x32xf32, #tpu.memory_space<any>> -> memref<1x32xf32, #tpu.memory_space<any>>
        %c0_i32_31 = arith.constant 0 : i32
        %70 = tpu.memref_slice %arg4[%68, %c0_i32_31] : memref<32x32xf32, #tpu.memory_space<vmem>> -> memref<1x32xf32, #tpu.memory_space<vmem>>
        %71 = tpu.memref_slice %arg5[%10] : memref<2x!tpu.dma_semaphore, #tpu.memory_space<semaphore_mem>> -> memref<1x!tpu.dma_semaphore, #tpu.memory_space<semaphore_mem>>
        %72 = tpu.memref_squeeze %71 : memref<1x!tpu.dma_semaphore, #tpu.memory_space<semaphore_mem>> -> memref<!tpu.dma_semaphore, #tpu.memory_space<semaphore_mem>>
        tpu.enqueue_dma source(%69 : memref<1x32xf32, #tpu.memory_space<any>>) target(%70 : memref<1x32xf32, #tpu.memory_space<vmem>>) target_semaphore(%72 : memref<!tpu.dma_semaphore, #tpu.memory_space<semaphore_mem>>)
        %c4_i32 = arith.constant 4 : i32
        %73 = arith.addi %36, %c4_i32 : i32
        %74 = arith.addi %32, %73 : i32
        %75 = arith.index_cast %74 : i32 to index
        %76 = memref.load %arg1[%75] : memref<16xi32, #tpu.memory_space<smem>>
        %77 = arith.addi %33, %73 : i32
        %c0_i32_32 = arith.constant 0 : i32
        %78 = tpu.memref_slice %arg2[%76, %c0_i32_32] : memref<64x32xf32, #tpu.memory_space<any>> -> memref<1x32xf32, #tpu.memory_space<any>>
        %c0_i32_33 = arith.constant 0 : i32
        %79 = tpu.memref_slice %arg4[%77, %c0_i32_33] : memref<32x32xf32, #tpu.memory_space<vmem>> -> memref<1x32xf32, #tpu.memory_space<vmem>>
        %80 = tpu.memref_slice %arg5[%10] : memref<2x!tpu.dma_semaphore, #tpu.memory_space<semaphore_mem>> -> memref<1x!tpu.dma_semaphore, #tpu.memory_space<semaphore_mem>>
        %81 = tpu.memref_squeeze %80 : memref<1x!tpu.dma_semaphore, #tpu.memory_space<semaphore_mem>> -> memref<!tpu.dma_semaphore, #tpu.memory_space<semaphore_mem>>
        tpu.enqueue_dma source(%78 : memref<1x32xf32, #tpu.memory_space<any>>) target(%79 : memref<1x32xf32, #tpu.memory_space<vmem>>) target_semaphore(%81 : memref<!tpu.dma_semaphore, #tpu.memory_space<semaphore_mem>>)
        %c5_i32 = arith.constant 5 : i32
        %82 = arith.addi %36, %c5_i32 : i32
        %83 = arith.addi %32, %82 : i32
        %84 = arith.index_cast %83 : i32 to index
        %85 = memref.load %arg1[%84] : memref<16xi32, #tpu.memory_space<smem>>
        %86 = arith.addi %33, %82 : i32
        %c0_i32_34 = arith.constant 0 : i32
        %87 = tpu.memref_slice %arg2[%85, %c0_i32_34] : memref<64x32xf32, #tpu.memory_space<any>> -> memref<1x32xf32, #tpu.memory_space<any>>
        %c0_i32_35 = arith.constant 0 : i32
        %88 = tpu.memref_slice %arg4[%86, %c0_i32_35] : memref<32x32xf32, #tpu.memory_space<vmem>> -> memref<1x32xf32, #tpu.memory_space<vmem>>
        %89 = tpu.memref_slice %arg5[%10] : memref<2x!tpu.dma_semaphore, #tpu.memory_space<semaphore_mem>> -> memref<1x!tpu.dma_semaphore, #tpu.memory_space<semaphore_mem>>
        %90 = tpu.memref_squeeze %89 : memref<1x!tpu.dma_semaphore, #tpu.memory_space<semaphore_mem>> -> memref<!tpu.dma_semaphore, #tpu.memory_space<semaphore_mem>>
        tpu.enqueue_dma source(%87 : memref<1x32xf32, #tpu.memory_space<any>>) target(%88 : memref<1x32xf32, #tpu.memory_space<vmem>>) target_semaphore(%90 : memref<!tpu.dma_semaphore, #tpu.memory_space<semaphore_mem>>)
        %c6_i32 = arith.constant 6 : i32
        %91 = arith.addi %36, %c6_i32 : i32
        %92 = arith.addi %32, %91 : i32
        %93 = arith.index_cast %92 : i32 to index
        %94 = memref.load %arg1[%93] : memref<16xi32, #tpu.memory_space<smem>>
        %95 = arith.addi %33, %91 : i32
        %c0_i32_36 = arith.constant 0 : i32
        %96 = tpu.memref_slice %arg2[%94, %c0_i32_36] : memref<64x32xf32, #tpu.memory_space<any>> -> memref<1x32xf32, #tpu.memory_space<any>>
        %c0_i32_37 = arith.constant 0 : i32
        %97 = tpu.memref_slice %arg4[%95, %c0_i32_37] : memref<32x32xf32, #tpu.memory_space<vmem>> -> memref<1x32xf32, #tpu.memory_space<vmem>>
        %98 = tpu.memref_slice %arg5[%10] : memref<2x!tpu.dma_semaphore, #tpu.memory_space<semaphore_mem>> -> memref<1x!tpu.dma_semaphore, #tpu.memory_space<semaphore_mem>>
        %99 = tpu.memref_squeeze %98 : memref<1x!tpu.dma_semaphore, #tpu.memory_space<semaphore_mem>> -> memref<!tpu.dma_semaphore, #tpu.memory_space<semaphore_mem>>
        tpu.enqueue_dma source(%96 : memref<1x32xf32, #tpu.memory_space<any>>) target(%97 : memref<1x32xf32, #tpu.memory_space<vmem>>) target_semaphore(%99 : memref<!tpu.dma_semaphore, #tpu.memory_space<semaphore_mem>>)
        %c7_i32 = arith.constant 7 : i32
        %100 = arith.addi %36, %c7_i32 : i32
        %101 = arith.addi %32, %100 : i32
        %102 = arith.index_cast %101 : i32 to index
        %103 = memref.load %arg1[%102] : memref<16xi32, #tpu.memory_space<smem>>
        %104 = arith.addi %33, %100 : i32
        %c0_i32_38 = arith.constant 0 : i32
        %105 = tpu.memref_slice %arg2[%103, %c0_i32_38] : memref<64x32xf32, #tpu.memory_space<any>> -> memref<1x32xf32, #tpu.memory_space<any>>
        %c0_i32_39 = arith.constant 0 : i32
        %106 = tpu.memref_slice %arg4[%104, %c0_i32_39] : memref<32x32xf32, #tpu.memory_space<vmem>> -> memref<1x32xf32, #tpu.memory_space<vmem>>
        %107 = tpu.memref_slice %arg5[%10] : memref<2x!tpu.dma_semaphore, #tpu.memory_space<semaphore_mem>> -> memref<1x!tpu.dma_semaphore, #tpu.memory_space<semaphore_mem>>
        %108 = tpu.memref_squeeze %107 : memref<1x!tpu.dma_semaphore, #tpu.memory_space<semaphore_mem>> -> memref<!tpu.dma_semaphore, #tpu.memory_space<semaphore_mem>>
        tpu.enqueue_dma source(%105 : memref<1x32xf32, #tpu.memory_space<any>>) target(%106 : memref<1x32xf32, #tpu.memory_space<vmem>>) target_semaphore(%108 : memref<!tpu.dma_semaphore, #tpu.memory_space<semaphore_mem>>)
      }
      %c2_i32_20 = arith.constant 2 : i32
    } else {
    }
    %c16_i32 = arith.constant 16 : i32
    %18 = arith.muli %9, %c16_i32 : i32
    %19 = tpu.assume_multiple %18, 8 : i32
    %c16_i32_9 = arith.constant 16 : i32
    %20 = arith.muli %10, %c16_i32_9 : i32
    %21 = tpu.assume_multiple %20, 8 : i32
    %c0_i32_10 = arith.constant 0 : i32
    %22 = tpu.memref_slice %arg4[%21, %c0_i32_10] : memref<32x32xf32, #tpu.memory_space<vmem>> -> memref<16x32xf32, #tpu.memory_space<vmem>>
    %c0_i32_11 = arith.constant 0 : i32
    %23 = tpu.memref_slice %arg4[%19, %c0_i32_11] : memref<32x32xf32, #tpu.memory_space<vmem>> -> memref<16x32xf32, #tpu.memory_space<vmem>>
    %24 = tpu.memref_slice %arg5[%9] : memref<2x!tpu.dma_semaphore, #tpu.memory_space<semaphore_mem>> -> memref<1x!tpu.dma_semaphore, #tpu.memory_space<semaphore_mem>>
    %25 = tpu.memref_squeeze %24 : memref<1x!tpu.dma_semaphore, #tpu.memory_space<semaphore_mem>> -> memref<!tpu.dma_semaphore, #tpu.memory_space<semaphore_mem>>
    tpu.wait_dma2 semaphore(%25 : memref<!tpu.dma_semaphore, #tpu.memory_space<semaphore_mem>>) src(%22 : memref<16x32xf32, #tpu.memory_space<vmem>>) dst(%23 : memref<16x32xf32, #tpu.memory_space<vmem>>)
    %26 = arith.index_cast %19 : i32 to index
    %c0 = arith.constant 0 : index
    %27 = vector.load %arg4[%26, %c0] : memref<32x32xf32, #tpu.memory_space<vmem>>, vector<16x32xf32>
    %cst = arith.constant 5.65685415 : f32
    %28 = vector.broadcast %cst : f32 to vector<16x32xf32>
    %29 = arith.mulf %27, %28 : vector<16x32xf32>
    %c0_12 = arith.constant 0 : index
    %c0_13 = arith.constant 0 : index
    %30 = vector.load %arg3[%c0_12, %c0_13] : memref<16x32xf32, #tpu.memory_space<vmem>>, vector<16x32xf32>
    tpu.vector_store %arg3[%c0_12, %c0_13], %29 {strides = array<i32>} : memref<16x32xf32, #tpu.memory_space<vmem>>, vector<16x32xf32>,
    return
  }
  func.func @transform_1(%arg0: i32, %arg1: memref<16xi32, #tpu.memory_space<smem>>) -> (i32, i32) {
    %c0_i32 = arith.constant 0 : i32
    %c0_i32_0 = arith.constant 0 : i32
    return %arg0, %c0_i32 : i32, i32
  }
}

</mosaic_0001>

<llo_original>
// kernel: tpu_custom_call.1
$region0: #{tpu_custom_call.1}
  #allocation0 [shape = 'u32[]', space=smem, size = 0x4, offset = 0x4, fixed_abs, tag = 'smem constant byte address 0x4 - core index']
  #allocation1 [shape = 'u32[144,128]{1,0:T(1,128)}', space=vmem, size = 0x12000, scoped, tag = 'internal scratch']
  #allocation2 [shape = 'f32[32,32]{1,0:T(8,128)}', space=vmem, size = 0x4000, scoped, tag = 'scratch operand']
  #allocation3 [shape = 's32[2]{0}', space=sflag, size = 0x8, scoped, tag = 'scratch operand']
  #allocation4 [shape = 's32[1]{0}', space=sflag, size = 0x4, scoped, tag = 'scoped memory for tpu_custom_call.1']
  #allocation5 [shape = 'u8[512]{0}', space=smem, size = 0x200, scoped, tag = 'prefetched SMEM operand 0']
  #allocation8 [shape = 's32[]', space=sflag, size = 0x4, offset = 0, fixed_abs, tag = 'sflag constant byte address 0x0 - dummy sync flag']
  #allocation9 [shape = 's32[]', space=sflag, size = 0x4, offset = 0, fixed_abs, tag = 'sflag constant byte address 0x0 - dummy sync flag']
  #allocation10 [shape = 's32[]', space=sflag, size = 0x4, offset = 0, fixed_abs, tag = 'sflag constant byte address 0x0 - dummy sync flag']
  #allocation11 [shape = 's32[]', space=sflag, size = 0x4, offset = 0, fixed_abs, tag = 'sflag constant byte address 0x0 - dummy sync flag']
  #allocation12 [shape = 's32[]', space=sflag, size = 0x4, offset = 0, fixed_abs, tag = 'sflag constant byte address 0x0 - dummy sync flag']
  #allocation13 [shape = 's32[]', space=sflag, size = 0x4, offset = 0, fixed_abs, tag = 'sflag constant byte address 0x0 - dummy sync flag']
  #allocation14 [shape = 's32[]', space=sflag, size = 0x4, offset = 0, fixed_abs, tag = 'sflag constant byte address 0x0 - dummy sync flag']
  #allocation15 [shape = 's32[]', space=sflag, size = 0x4, offset = 0, fixed_abs, tag = 'sflag constant byte address 0x0 - dummy sync flag']
  #allocation16 [shape = 's32[]', space=sflag, size = 0x4, offset = 0, fixed_abs, tag = 'sflag constant byte address 0x0 - dummy sync flag']
  #allocation17 [shape = 's32[]', space=sflag, size = 0x4, offset = 0, fixed_abs, tag = 'sflag constant byte address 0x0 - dummy sync flag']
  #allocation18 [shape = 's32[]', space=sflag, size = 0x4, offset = 0, fixed_abs, tag = 'sflag constant byte address 0x0 - dummy sync flag']
  #allocation19 [shape = 's32[]', space=sflag, size = 0x4, offset = 0, fixed_abs, tag = 'sflag constant byte address 0x0 - dummy sync flag']
  #allocation20 [shape = 's32[]', space=sflag, size = 0x4, offset = 0, fixed_abs, tag = 'sflag constant byte address 0x0 - dummy sync flag']
  #allocation21 [shape = 's32[]', space=sflag, size = 0x4, offset = 0, fixed_abs, tag = 'sflag constant byte address 0x0 - dummy sync flag']
  #allocation22 [shape = 's32[]', space=sflag, size = 0x4, offset = 0, fixed_abs, tag = 'sflag constant byte address 0x0 - dummy sync flag']
  #allocation23 [shape = 's32[]', space=sflag, size = 0x4, offset = 0, fixed_abs, tag = 'sflag constant byte address 0x0 - dummy sync flag']
  %s0 = inlined_call_operand.vmem [shape: s32[16], index: 0, kind: input, shape index: {}]
  %s1 = inlined_call_operand.vmem [shape: f32[64,32], index: 1, kind: input, shape index: {}]
  %s2 = inlined_call_operand.hbm [shape: f32[16,32], index: 2, kind: output, shape index: {}]
  %s3 = sld [smem:[#allocation0]]
  $region512: #{tpu_custom_call.1} parent=0
    _
  %s5 = ssub.s32 1, %s3
  %s6 = scalar_select 0, %s5, %s3
  %s7 = sshll.u32 %s0, 4
  %s8 = int_to_ptr.vmem [resolvable:$true] %s7
  %10 = dma.vmem_to_smem %s8, 16, [#allocation5], [#allocation4]
  %11 = dma.done [#allocation4], 16
  %12 = sfence
  $region1: #{tpu_custom_call.1} parent=0
    #allocation6 [shape = 'u8[8192]{0}', space=vmem, size = 0x2000, scoped, tag = 'output window, operand 0, single buffered']
    #allocation7 [shape = 's32[1]{0}', space=sflag, size = 0x4, scoped, tag = 'scoped memory for tpu_custom_call.1']
    %13 = vsyncpa [#allocation7], 0
    %s14 = ssub.s32 0, 0
    %s15 = ssub.s32 0, 0
    %p16 = scmp.ne.s32.totalorder 0, 0
    %p17 = scmp.lt.s32.totalorder 0, 0
    %p18 = pnand %p17, %p16
    %p19 = pneg %p18
    %s20 = sadd.s32 0, 2
    %s21 = scalar_select %p19, %s20, 0
    %s22 = ssub.s32 1, %s21
    %p23 = scmp.eq.s32.totalorder 0, 0
    // Predicated region
    $region2: #{tpu_custom_call.1} parent=1 // pred_check
      %p24 = pneg %p23
    $region3: #{tpu_custom_call.1} parent=1 // pred_check_branch
      %26 = sbr.rel (%p24) target = $region5
    $region4: #{tpu_custom_call.1} parent=1 // pred_region
      %s27 = smul.u32 %s21, 16
      loop: start=0, step=1, limit=2
      $region6: #{tpu_custom_call.1} parent=4 // loop_pre_header
        _
      $region7: #{tpu_custom_call.1} parent=4 // loop_header
        %s29 = sphi 0, %s33
        %p30 = scmp.ge.s32.totalorder %s29, 2
      $region8: #{tpu_custom_call.1} parent=4 // loop_header_branch
        %32 = sbr.rel (%p30) target = $region12
      $region9: #{tpu_custom_call.1} parent=4 // loop_body
        %s34 = smul.u32 %s29, 8
        %s35 = sld [smem:[#allocation5 + %s34]]
        %s36 = sadd.s32 %s27, %s34
        %s37 = scalar_lea.vmem %s1, %s35
        %s38 = scalar_lea.vmem [#allocation2], %s36
        %s39 = scalar_lea.sflag [#allocation3], %s21
        %p41 = scmp.lt.u32.totalorder 1, 8
        %p42 = pneg %p41
        // Predicated region
        $region13: #{tpu_custom_call.1} parent=9 // pred_check
          _
        $region14: #{tpu_custom_call.1} parent=9 // pred_check_branch
          %44 = sbr.rel (%p41) target = $region16
        $region15: #{tpu_custom_call.1} parent=9 // pred_region
          %s59 = sand.u32 1, 7
          %p60 = scmp.eq.s32.totalorder %s59, 0
          %p61 = pneg %p60
          // Predicated region
          $region28: #{tpu_custom_call.1} parent=15 // pred_check
            _
          $region29: #{tpu_custom_call.1} parent=15 // pred_check_branch
            %63 = sbr.rel (%p60) target = $region31
          $region30: #{tpu_custom_call.1} parent=15 // pred_region
            %s64 = sand.u32 1, 7
            %s65 = ssub.s32 1, %s64
            %s66 = scalar_lea.vmem %s37, %s65
            %s67 = ssub.s32 1, %s64
            %s68 = scalar_lea.vmem %s38, %s67 [#allocation2]
            %s69 = sshllo.u32 0, %s64
            loop: start=0, step=1, limit=1
            $region32: #{tpu_custom_call.1} parent=30 // loop_pre_header
              _
            $region33: #{tpu_custom_call.1} parent=30 // loop_header
              %s71 = sphi 0, %s75
              %p72 = scmp.ge.s32.totalorder %s71, 1
              %s76 = sphi %s66, %s66
              %s77 = sphi %s68, %s68
            $region34: #{tpu_custom_call.1} parent=30 // loop_header_branch
              %74 = sbr.rel (%p72) target = $region38
            $region35: #{tpu_custom_call.1} parent=30 // loop_body
              %v78 = vld [vmem:[%s76] sm:%s69]
              %79 = vst [vmem:[%s77] sm:%s69] %v78
            $region36: #{tpu_custom_call.1} parent=30 // loop_footer
              %s75 = sadd.s32 1, %s71
            $region37: #{tpu_custom_call.1} parent=30 // loop_footer_branch
              %70 = sbr.rel target = $region33
            $region38: #{tpu_custom_call.1} parent=30 // loop_exit
              _
          $region31: #{tpu_custom_call.1} parent=15 // pred_fallthru
            _
        $region16: #{tpu_custom_call.1} parent=9 // pred_fallthru
          _
        // Predicated region
        $region17: #{tpu_custom_call.1} parent=9 // pred_check
          %p45 = pneg %p41
        $region18: #{tpu_custom_call.1} parent=9 // pred_check_branch
          %47 = sbr.rel (%p45) target = $region20
        $region19: #{tpu_custom_call.1} parent=9 // pred_region
          %s48 = sshllo.u32 0, 1
          loop: start=0, step=1, limit=1
          $region21: #{tpu_custom_call.1} parent=19 // loop_pre_header
            _
          $region22: #{tpu_custom_call.1} parent=19 // loop_header
            %s50 = sphi 0, %s54
            %p51 = scmp.ge.s32.totalorder %s50, 1
            %s55 = sphi %s37, %s37
            %s56 = sphi %s38, %s38
          $region23: #{tpu_custom_call.1} parent=19 // loop_header_branch
            %53 = sbr.rel (%p51) target = $region27
          $region24: #{tpu_custom_call.1} parent=19 // loop_body
            %v57 = vld [vmem:[%s55] sm:%s48]
            %58 = vst [vmem:[%s56] sm:%s48] %v57
          $region25: #{tpu_custom_call.1} parent=19 // loop_footer
            %s54 = sadd.s32 1, %s50
          $region26: #{tpu_custom_call.1} parent=19 // loop_footer_branch
            %49 = sbr.rel target = $region22
          $region27: #{tpu_custom_call.1} parent=19 // loop_exit
            _
        $region20: #{tpu_custom_call.1} parent=9 // pred_fallthru
          _
        // Predicated region
        $region39: #{tpu_custom_call.1} parent=9 // pred_check
          _
        $region40: #{tpu_custom_call.1} parent=9 // pred_check_branch
          %82 = sbr.rel (0) target = $region42
        $region41: #{tpu_custom_call.1} parent=9 // pred_region
          %83 = vsyncadd %s39, 16
        $region42: #{tpu_custom_call.1} parent=9 // pred_fallthru
          _
        %s84 = sadd.s32 %s34, 1
        %s85 = sld [smem:[#allocation5 + %s84]]
        %s86 = sadd.s32 %s27, %s84
        %s87 = scalar_lea.vmem %s1, %s85
        %s88 = scalar_lea.vmem [#allocation2], %s86
        %p90 = scmp.lt.u32.totalorder 1, 8
        %p91 = pneg %p90
        // Predicated region
        $region43: #{tpu_custom_call.1} parent=9 // pred_check
          _
        $region44: #{tpu_custom_call.1} parent=9 // pred_check_branch
          %93 = sbr.rel (%p90) target = $region46
        $region45: #{tpu_custom_call.1} parent=9 // pred_region
          %s108 = sand.u32 1, 7
          %p109 = scmp.eq.s32.totalorder %s108, 0
          %p110 = pneg %p109
          // Predicated region
          $region58: #{tpu_custom_call.1} parent=45 // pred_check
            _
          $region59: #{tpu_custom_call.1} parent=45 // pred_check_branch
            %112 = sbr.rel (%p109) target = $region61
          $region60: #{tpu_custom_call.1} parent=45 // pred_region
            %s113 = sand.u32 1, 7
            %s114 = ssub.s32 1, %s113
            %s115 = scalar_lea.vmem %s87, %s114
            %s116 = ssub.s32 1, %s113
            %s117 = scalar_lea.vmem %s88, %s116 [#allocation2]
            %s118 = sshllo.u32 0, %s113
            loop: start=0, step=1, limit=1
            $region62: #{tpu_custom_call.1} parent=60 // loop_pre_header
              _
            $region63: #{tpu_custom_call.1} parent=60 // loop_header
              %s120 = sphi 0, %s124
              %p121 = scmp.ge.s32.totalorder %s120, 1
              %s125 = sphi %s115, %s115
              %s126 = sphi %s117, %s117
            $region64: #{tpu_custom_call.1} parent=60 // loop_header_branch
              %123 = sbr.rel (%p121) target = $region68
            $region65: #{tpu_custom_call.1} parent=60 // loop_body
              %v127 = vld [vmem:[%s125] sm:%s118]
              %128 = vst [vmem:[%s126] sm:%s118] %v127
            $region66: #{tpu_custom_call.1} parent=60 // loop_footer
              %s124 = sadd.s32 1, %s120
            $region67: #{tpu_custom_call.1} parent=60 // loop_footer_branch
              %119 = sbr.rel target = $region63
            $region68: #{tpu_custom_call.1} parent=60 // loop_exit
              _
          $region61: #{tpu_custom_call.1} parent=45 // pred_fallthru
            _
        $region46: #{tpu_custom_call.1} parent=9 // pred_fallthru
          _
        // Predicated region
        $region47: #{tpu_custom_call.1} parent=9 // pred_check
          %p94 = pneg %p90
        $region48: #{tpu_custom_call.1} parent=9 // pred_check_branch
          %96 = sbr.rel (%p94) target = $region50
        $region49: #{tpu_custom_call.1} parent=9 // pred_region
          %s97 = sshllo.u32 0, 1
          loop: start=0, step=1, limit=1
          $region51: #{tpu_custom_call.1} parent=49 // loop_pre_header
            _
          $region52: #{tpu_custom_call.1} parent=49 // loop_header
            %s99 = sphi 0, %s103
            %p100 = scmp.ge.s32.totalorder %s99, 1
            %s104 = sphi %s87, %s87
            %s105 = sphi %s88, %s88
          $region53: #{tpu_custom_call.1} parent=49 // loop_header_branch
            %102 = sbr.rel (%p100) target = $region57
          $region54: #{tpu_custom_call.1} parent=49 // loop_body
            %v106 = vld [vmem:[%s104] sm:%s97]
            %107 = vst [vmem:[%s105] sm:%s97] %v106
          $region55: #{tpu_custom_call.1} parent=49 // loop_footer
            %s103 = sadd.s32 1, %s99
          $region56: #{tpu_custom_call.1} parent=49 // loop_footer_branch
            %98 = sbr.rel target = $region52
          $region57: #{tpu_custom_call.1} parent=49 // loop_exit
            _
        $region50: #{tpu_custom_call.1} parent=9 // pred_fallthru
          _
        // Predicated region
        $region69: #{tpu_custom_call.1} parent=9 // pred_check
          _
        $region70: #{tpu_custom_call.1} parent=9 // pred_check_branch
          %131 = sbr.rel (0) target = $region72
        $region71: #{tpu_custom_call.1} parent=9 // pred_region
          %132 = vsyncadd %s39, 16
        $region72: #{tpu_custom_call.1} parent=9 // pred_fallthru
          _
        %s133 = sadd.s32 %s34, 2
        %s134 = sld [smem:[#allocation5 + %s133]]
        %s135 = sadd.s32 %s27, %s133
        %s136 = scalar_lea.vmem %s1, %s134
        %s137 = scalar_lea.vmem [#allocation2], %s135
        %p139 = scmp.lt.u32.totalorder 1, 8
        %p140 = pneg %p139
        // Predicated region
        $region73: #{tpu_custom_call.1} parent=9 // pred_check
          _
        $region74: #{tpu_custom_call.1} parent=9 // pred_check_branch
          %142 = sbr.rel (%p139) target = $region76
        $region75: #{tpu_custom_call.1} parent=9 // pred_region
          %s157 = sand.u32 1, 7
          %p158 = scmp.eq.s32.totalorder %s157, 0
          %p159 = pneg %p158
          // Predicated region
          $region88: #{tpu_custom_call.1} parent=75 // pred_check
            _
          $region89: #{tpu_custom_call.1} parent=75 // pred_check_branch
            %161 = sbr.rel (%p158) target = $region91
          $region90: #{tpu_custom_call.1} parent=75 // pred_region
            %s162 = sand.u32 1, 7
            %s163 = ssub.s32 1, %s162
            %s164 = scalar_lea.vmem %s136, %s163
            %s165 = ssub.s32 1, %s162
            %s166 = scalar_lea.vmem %s137, %s165 [#allocation2]
            %s167 = sshllo.u32 0, %s162
            loop: start=0, step=1, limit=1
            $region92: #{tpu_custom_call.1} parent=90 // loop_pre_header
              _
            $region93: #{tpu_custom_call.1} parent=90 // loop_header
              %s169 = sphi 0, %s173
              %p170 = scmp.ge.s32.totalorder %s169, 1
              %s174 = sphi %s164, %s164
              %s175 = sphi %s166, %s166
            $region94: #{tpu_custom_call.1} parent=90 // loop_header_branch
              %172 = sbr.rel (%p170) target = $region98
            $region95: #{tpu_custom_call.1} parent=90 // loop_body
              %v176 = vld [vmem:[%s174] sm:%s167]
              %177 = vst [vmem:[%s175] sm:%s167] %v176
            $region96: #{tpu_custom_call.1} parent=90 // loop_footer
              %s173 = sadd.s32 1, %s169
            $region97: #{tpu_custom_call.1} parent=90 // loop_footer_branch
              %168 = sbr.rel target = $region93
            $region98: #{tpu_custom_call.1} parent=90 // loop_exit
              _
          $region91: #{tpu_custom_call.1} parent=75 // pred_fallthru
            _
        $region76: #{tpu_custom_call.1} parent=9 // pred_fallthru
          _
        // Predicated region
        $region77: #{tpu_custom_call.1} parent=9 // pred_check
          %p143 = pneg %p139
        $region78: #{tpu_custom_call.1} parent=9 // pred_check_branch
          %145 = sbr.rel (%p143) target = $region80
        $region79: #{tpu_custom_call.1} parent=9 // pred_region
          %s146 = sshllo.u32 0, 1
          loop: start=0, step=1, limit=1
          $region81: #{tpu_custom_call.1} parent=79 // loop_pre_header
            _
          $region82: #{tpu_custom_call.1} parent=79 // loop_header
            %s148 = sphi 0, %s152
            %p149 = scmp.ge.s32.totalorder %s148, 1
            %s153 = sphi %s136, %s136
            %s154 = sphi %s137, %s137
          $region83: #{tpu_custom_call.1} parent=79 // loop_header_branch
            %151 = sbr.rel (%p149) target = $region87
          $region84: #{tpu_custom_call.1} parent=79 // loop_body
            %v155 = vld [vmem:[%s153] sm:%s146]
            %156 = vst [vmem:[%s154] sm:%s146] %v155
          $region85: #{tpu_custom_call.1} parent=79 // loop_footer
            %s152 = sadd.s32 1, %s148
          $region86: #{tpu_custom_call.1} parent=79 // loop_footer_branch
            %147 = sbr.rel target = $region82
          $region87: #{tpu_custom_call.1} parent=79 // loop_exit
            _
        $region80: #{tpu_custom_call.1} parent=9 // pred_fallthru
          _
        // Predicated region
        $region99: #{tpu_custom_call.1} parent=9 // pred_check
          _
        $region100: #{tpu_custom_call.1} parent=9 // pred_check_branch
          %180 = sbr.rel (0) target = $region102
        $region101: #{tpu_custom_call.1} parent=9 // pred_region
          %181 = vsyncadd %s39, 16
        $region102: #{tpu_custom_call.1} parent=9 // pred_fallthru
          _
        %s182 = sadd.s32 %s34, 3
        %s183 = sld [smem:[#allocation5 + %s182]]
        %s184 = sadd.s32 %s27, %s182
        %s185 = scalar_lea.vmem %s1, %s183
        %s186 = scalar_lea.vmem [#allocation2], %s184
        %p188 = scmp.lt.u32.totalorder 1, 8
        %p189 = pneg %p188
        // Predicated region
        $region103: #{tpu_custom_call.1} parent=9 // pred_check
          _
        $region104: #{tpu_custom_call.1} parent=9 // pred_check_branch
          %191 = sbr.rel (%p188) target = $region106
        $region105: #{tpu_custom_call.1} parent=9 // pred_region
          %s206 = sand.u32 1, 7
          %p207 = scmp.eq.s32.totalorder %s206, 0
          %p208 = pneg %p207
          // Predicated region
          $region118: #{tpu_custom_call.1} parent=105 // pred_check
            _
          $region119: #{tpu_custom_call.1} parent=105 // pred_check_branch
            %210 = sbr.rel (%p207) target = $region121
          $region120: #{tpu_custom_call.1} parent=105 // pred_region
            %s211 = sand.u32 1, 7
            %s212 = ssub.s32 1, %s211
            %s213 = scalar_lea.vmem %s185, %s212
            %s214 = ssub.s32 1, %s211
            %s215 = scalar_lea.vmem %s186, %s214 [#allocation2]
            %s216 = sshllo.u32 0, %s211
            loop: start=0, step=1, limit=1
            $region122: #{tpu_custom_call.1} parent=120 // loop_pre_header
              _
            $region123: #{tpu_custom_call.1} parent=120 // loop_header
              %s218 = sphi 0, %s222
              %p219 = scmp.ge.s32.totalorder %s218, 1
              %s223 = sphi %s213, %s213
              %s224 = sphi %s215, %s215
            $region124: #{tpu_custom_call.1} parent=120 // loop_header_branch
              %221 = sbr.rel (%p219) target = $region128
            $region125: #{tpu_custom_call.1} parent=120 // loop_body
              %v225 = vld [vmem:[%s223] sm:%s216]
              %226 = vst [vmem:[%s224] sm:%s216] %v225
            $region126: #{tpu_custom_call.1} parent=120 // loop_footer
              %s222 = sadd.s32 1, %s218
            $region127: #{tpu_custom_call.1} parent=120 // loop_footer_branch
              %217 = sbr.rel target = $region123
            $region128: #{tpu_custom_call.1} parent=120 // loop_exit
              _
          $region121: #{tpu_custom_call.1} parent=105 // pred_fallthru
            _
        $region106: #{tpu_custom_call.1} parent=9 // pred_fallthru
          _
        // Predicated region
        $region107: #{tpu_custom_call.1} parent=9 // pred_check
          %p192 = pneg %p188
        $region108: #{tpu_custom_call.1} parent=9 // pred_check_branch
          %194 = sbr.rel (%p192) target = $region110
        $region109: #{tpu_custom_call.1} parent=9 // pred_region
          %s195 = sshllo.u32 0, 1
          loop: start=0, step=1, limit=1
          $region111: #{tpu_custom_call.1} parent=109 // loop_pre_header
            _
          $region112: #{tpu_custom_call.1} parent=109 // loop_header
            %s197 = sphi 0, %s201
            %p198 = scmp.ge.s32.totalorder %s197, 1
            %s202 = sphi %s185, %s185
            %s203 = sphi %s186, %s186
          $region113: #{tpu_custom_call.1} parent=109 // loop_header_branch
            %200 = sbr.rel (%p198) target = $region117
          $region114: #{tpu_custom_call.1} parent=109 // loop_body
            %v204 = vld [vmem:[%s202] sm:%s195]
            %205 = vst [vmem:[%s203] sm:%s195] %v204
          $region115: #{tpu_custom_call.1} parent=109 // loop_footer
            %s201 = sadd.s32 1, %s197
          $region116: #{tpu_custom_call.1} parent=109 // loop_footer_branch
            %196 = sbr.rel target = $region112
          $region117: #{tpu_custom_call.1} parent=109 // loop_exit
            _
        $region110: #{tpu_custom_call.1} parent=9 // pred_fallthru
          _
        // Predicated region
        $region129: #{tpu_custom_call.1} parent=9 // pred_check
          _
        $region130: #{tpu_custom_call.1} parent=9 // pred_check_branch
          %229 = sbr.rel (0) target = $region132
        $region131: #{tpu_custom_call.1} parent=9 // pred_region
          %230 = vsyncadd %s39, 16
        $region132: #{tpu_custom_call.1} parent=9 // pred_fallthru
          _
        %s231 = sadd.s32 %s34, 4
        %s232 = sld [smem:[#allocation5 + %s231]]
        %s233 = sadd.s32 %s27, %s231
        %s234 = scalar_lea.vmem %s1, %s232
        %s235 = scalar_lea.vmem [#allocation2], %s233
        %p237 = scmp.lt.u32.totalorder 1, 8
        %p238 = pneg %p237
        // Predicated region
        $region133: #{tpu_custom_call.1} parent=9 // pred_check
          _
        $region134: #{tpu_custom_call.1} parent=9 // pred_check_branch
          %240 = sbr.rel (%p237) target = $region136
        $region135: #{tpu_custom_call.1} parent=9 // pred_region
          %s255 = sand.u32 1, 7
          %p256 = scmp.eq.s32.totalorder %s255, 0
          %p257 = pneg %p256
          // Predicated region
          $region148: #{tpu_custom_call.1} parent=135 // pred_check
            _
          $region149: #{tpu_custom_call.1} parent=135 // pred_check_branch
            %259 = sbr.rel (%p256) target = $region151
          $region150: #{tpu_custom_call.1} parent=135 // pred_region
            %s260 = sand.u32 1, 7
            %s261 = ssub.s32 1, %s260
            %s262 = scalar_lea.vmem %s234, %s261
            %s263 = ssub.s32 1, %s260
            %s264 = scalar_lea.vmem %s235, %s263 [#allocation2]
            %s265 = sshllo.u32 0, %s260
            loop: start=0, step=1, limit=1
            $region152: #{tpu_custom_call.1} parent=150 // loop_pre_header
              _
            $region153: #{tpu_custom_call.1} parent=150 // loop_header
              %s267 = sphi 0, %s271
              %p268 = scmp.ge.s32.totalorder %s267, 1
              %s272 = sphi %s262, %s262
              %s273 = sphi %s264, %s264
            $region154: #{tpu_custom_call.1} parent=150 // loop_header_branch
              %270 = sbr.rel (%p268) target = $region158
            $region155: #{tpu_custom_call.1} parent=150 // loop_body
              %v274 = vld [vmem:[%s272] sm:%s265]
              %275 = vst [vmem:[%s273] sm:%s265] %v274
            $region156: #{tpu_custom_call.1} parent=150 // loop_footer
              %s271 = sadd.s32 1, %s267
            $region157: #{tpu_custom_call.1} parent=150 // loop_footer_branch
              %266 = sbr.rel target = $region153
            $region158: #{tpu_custom_call.1} parent=150 // loop_exit
              _
          $region151: #{tpu_custom_call.1} parent=135 // pred_fallthru
            _
        $region136: #{tpu_custom_call.1} parent=9 // pred_fallthru
          _
        // Predicated region
        $region137: #{tpu_custom_call.1} parent=9 // pred_check
          %p241 = pneg %p237
        $region138: #{tpu_custom_call.1} parent=9 // pred_check_branch
          %243 = sbr.rel (%p241) target = $region140
        $region139: #{tpu_custom_call.1} parent=9 // pred_region
          %s244 = sshllo.u32 0, 1
          loop: start=0, step=1, limit=1
          $region141: #{tpu_custom_call.1} parent=139 // loop_pre_header
            _
          $region142: #{tpu_custom_call.1} parent=139 // loop_header
            %s246 = sphi 0, %s250
            %p247 = scmp.ge.s32.totalorder %s246, 1
            %s251 = sphi %s234, %s234
            %s252 = sphi %s235, %s235
          $region143: #{tpu_custom_call.1} parent=139 // loop_header_branch
            %249 = sbr.rel (%p247) target = $region147
          $region144: #{tpu_custom_call.1} parent=139 // loop_body
            %v253 = vld [vmem:[%s251] sm:%s244]
            %254 = vst [vmem:[%s252] sm:%s244] %v253
          $region145: #{tpu_custom_call.1} parent=139 // loop_footer
            %s250 = sadd.s32 1, %s246
          $region146: #{tpu_custom_call.1} parent=139 // loop_footer_branch
            %245 = sbr.rel target = $region142
          $region147: #{tpu_custom_call.1} parent=139 // loop_exit
            _
        $region140: #{tpu_custom_call.1} parent=9 // pred_fallthru
          _
        // Predicated region
        $region159: #{tpu_custom_call.1} parent=9 // pred_check
          _
        $region160: #{tpu_custom_call.1} parent=9 // pred_check_branch
          %278 = sbr.rel (0) target = $region162
        $region161: #{tpu_custom_call.1} parent=9 // pred_region
          %279 = vsyncadd %s39, 16
        $region162: #{tpu_custom_call.1} parent=9 // pred_fallthru
          _
        %s280 = sadd.s32 %s34, 5
        %s281 = sld [smem:[#allocation5 + %s280]]
        %s282 = sadd.s32 %s27, %s280
        %s283 = scalar_lea.vmem %s1, %s281
        %s284 = scalar_lea.vmem [#allocation2], %s282
        %p286 = scmp.lt.u32.totalorder 1, 8
        %p287 = pneg %p286
        // Predicated region
        $region163: #{tpu_custom_call.1} parent=9 // pred_check
          _
        $region164: #{tpu_custom_call.1} parent=9 // pred_check_branch
          %289 = sbr.rel (%p286) target = $region166
        $region165: #{tpu_custom_call.1} parent=9 // pred_region
          %s304 = sand.u32 1, 7
          %p305 = scmp.eq.s32.totalorder %s304, 0
          %p306 = pneg %p305
          // Predicated region
          $region178: #{tpu_custom_call.1} parent=165 // pred_check
            _
          $region179: #{tpu_custom_call.1} parent=165 // pred_check_branch
            %308 = sbr.rel (%p305) target = $region181
          $region180: #{tpu_custom_call.1} parent=165 // pred_region
            %s309 = sand.u32 1, 7
            %s310 = ssub.s32 1, %s309
            %s311 = scalar_lea.vmem %s283, %s310
            %s312 = ssub.s32 1, %s309
            %s313 = scalar_lea.vmem %s284, %s312 [#allocation2]
            %s314 = sshllo.u32 0, %s309
            loop: start=0, step=1, limit=1
            $region182: #{tpu_custom_call.1} parent=180 // loop_pre_header
              _
            $region183: #{tpu_custom_call.1} parent=180 // loop_header
              %s316 = sphi 0, %s320
              %p317 = scmp.ge.s32.totalorder %s316, 1
              %s321 = sphi %s311, %s311
              %s322 = sphi %s313, %s313
            $region184: #{tpu_custom_call.1} parent=180 // loop_header_branch
              %319 = sbr.rel (%p317) target = $region188
            $region185: #{tpu_custom_call.1} parent=180 // loop_body
              %v323 = vld [vmem:[%s321] sm:%s314]
              %324 = vst [vmem:[%s322] sm:%s314] %v323
            $region186: #{tpu_custom_call.1} parent=180 // loop_footer
              %s320 = sadd.s32 1, %s316
            $region187: #{tpu_custom_call.1} parent=180 // loop_footer_branch
              %315 = sbr.rel target = $region183
            $region188: #{tpu_custom_call.1} parent=180 // loop_exit
              _
          $region181: #{tpu_custom_call.1} parent=165 // pred_fallthru
            _
        $region166: #{tpu_custom_call.1} parent=9 // pred_fallthru
          _
        // Predicated region
        $region167: #{tpu_custom_call.1} parent=9 // pred_check
          %p290 = pneg %p286
        $region168: #{tpu_custom_call.1} parent=9 // pred_check_branch
          %292 = sbr.rel (%p290) target = $region170
        $region169: #{tpu_custom_call.1} parent=9 // pred_region
          %s293 = sshllo.u32 0, 1
          loop: start=0, step=1, limit=1
          $region171: #{tpu_custom_call.1} parent=169 // loop_pre_header
            _
          $region172: #{tpu_custom_call.1} parent=169 // loop_header
            %s295 = sphi 0, %s299
            %p296 = scmp.ge.s32.totalorder %s295, 1
            %s300 = sphi %s283, %s283
            %s301 = sphi %s284, %s284
          $region173: #{tpu_custom_call.1} parent=169 // loop_header_branch
            %298 = sbr.rel (%p296) target = $region177
          $region174: #{tpu_custom_call.1} parent=169 // loop_body
            %v302 = vld [vmem:[%s300] sm:%s293]
            %303 = vst [vmem:[%s301] sm:%s293] %v302
          $region175: #{tpu_custom_call.1} parent=169 // loop_footer
            %s299 = sadd.s32 1, %s295
          $region176: #{tpu_custom_call.1} parent=169 // loop_footer_branch
            %294 = sbr.rel target = $region172
          $region177: #{tpu_custom_call.1} parent=169 // loop_exit
            _
        $region170: #{tpu_custom_call.1} parent=9 // pred_fallthru
          _
        // Predicated region
        $region189: #{tpu_custom_call.1} parent=9 // pred_check
          _
        $region190: #{tpu_custom_call.1} parent=9 // pred_check_branch
          %327 = sbr.rel (0) target = $region192
        $region191: #{tpu_custom_call.1} parent=9 // pred_region
          %328 = vsyncadd %s39, 16
        $region192: #{tpu_custom_call.1} parent=9 // pred_fallthru
          _
        %s329 = sadd.s32 %s34, 6
        %s330 = sld [smem:[#allocation5 + %s329]]
        %s331 = sadd.s32 %s27, %s329
        %s332 = scalar_lea.vmem %s1, %s330
        %s333 = scalar_lea.vmem [#allocation2], %s331
        %p335 = scmp.lt.u32.totalorder 1, 8
        %p336 = pneg %p335
        // Predicated region
        $region193: #{tpu_custom_call.1} parent=9 // pred_check
          _
        $region194: #{tpu_custom_call.1} parent=9 // pred_check_branch
          %338 = sbr.rel (%p335) target = $region196
        $region195: #{tpu_custom_call.1} parent=9 // pred_region
          %s353 = sand.u32 1, 7
          %p354 = scmp.eq.s32.totalorder %s353, 0
          %p355 = pneg %p354
          // Predicated region
          $region208: #{tpu_custom_call.1} parent=195 // pred_check
            _
          $region209: #{tpu_custom_call.1} parent=195 // pred_check_branch
            %357 = sbr.rel (%p354) target = $region211
          $region210: #{tpu_custom_call.1} parent=195 // pred_region
            %s358 = sand.u32 1, 7
            %s359 = ssub.s32 1, %s358
            %s360 = scalar_lea.vmem %s332, %s359
            %s361 = ssub.s32 1, %s358
            %s362 = scalar_lea.vmem %s333, %s361 [#allocation2]
            %s363 = sshllo.u32 0, %s358
            loop: start=0, step=1, limit=1
            $region212: #{tpu_custom_call.1} parent=210 // loop_pre_header
              _
            $region213: #{tpu_custom_call.1} parent=210 // loop_header
              %s365 = sphi 0, %s369
              %p366 = scmp.ge.s32.totalorder %s365, 1
              %s370 = sphi %s360, %s360
              %s371 = sphi %s362, %s362
            $region214: #{tpu_custom_call.1} parent=210 // loop_header_branch
              %368 = sbr.rel (%p366) target = $region218
            $region215: #{tpu_custom_call.1} parent=210 // loop_body
              %v372 = vld [vmem:[%s370] sm:%s363]
              %373 = vst [vmem:[%s371] sm:%s363] %v372
            $region216: #{tpu_custom_call.1} parent=210 // loop_footer
              %s369 = sadd.s32 1, %s365
            $region217: #{tpu_custom_call.1} parent=210 // loop_footer_branch
              %364 = sbr.rel target = $region213
            $region218: #{tpu_custom_call.1} parent=210 // loop_exit
              _
          $region211: #{tpu_custom_call.1} parent=195 // pred_fallthru
            _
        $region196: #{tpu_custom_call.1} parent=9 // pred_fallthru
          _
        // Predicated region
        $region197: #{tpu_custom_call.1} parent=9 // pred_check
          %p339 = pneg %p335
        $region198: #{tpu_custom_call.1} parent=9 // pred_check_branch
          %341 = sbr.rel (%p339) target = $region200
        $region199: #{tpu_custom_call.1} parent=9 // pred_region
          %s342 = sshllo.u32 0, 1
          loop: start=0, step=1, limit=1
          $region201: #{tpu_custom_call.1} parent=199 // loop_pre_header
            _
          $region202: #{tpu_custom_call.1} parent=199 // loop_header
            %s344 = sphi 0, %s348
            %p345 = scmp.ge.s32.totalorder %s344, 1
            %s349 = sphi %s332, %s332
            %s350 = sphi %s333, %s333
          $region203: #{tpu_custom_call.1} parent=199 // loop_header_branch
            %347 = sbr.rel (%p345) target = $region207
          $region204: #{tpu_custom_call.1} parent=199 // loop_body
            %v351 = vld [vmem:[%s349] sm:%s342]
            %352 = vst [vmem:[%s350] sm:%s342] %v351
          $region205: #{tpu_custom_call.1} parent=199 // loop_footer
            %s348 = sadd.s32 1, %s344
          $region206: #{tpu_custom_call.1} parent=199 // loop_footer_branch
            %343 = sbr.rel target = $region202
          $region207: #{tpu_custom_call.1} parent=199 // loop_exit
            _
        $region200: #{tpu_custom_call.1} parent=9 // pred_fallthru
          _
        // Predicated region
        $region219: #{tpu_custom_call.1} parent=9 // pred_check
          _
        $region220: #{tpu_custom_call.1} parent=9 // pred_check_branch
          %376 = sbr.rel (0) target = $region222
        $region221: #{tpu_custom_call.1} parent=9 // pred_region
          %377 = vsyncadd %s39, 16
        $region222: #{tpu_custom_call.1} parent=9 // pred_fallthru
          _
        %s378 = sadd.s32 %s34, 7
        %s379 = sld [smem:[#allocation5 + %s378]]
        %s380 = sadd.s32 %s27, %s378
        %s381 = scalar_lea.vmem %s1, %s379
        %s382 = scalar_lea.vmem [#allocation2], %s380
        %p384 = scmp.lt.u32.totalorder 1, 8
        %p385 = pneg %p384
        // Predicated region
        $region223: #{tpu_custom_call.1} parent=9 // pred_check
          _
        $region224: #{tpu_custom_call.1} parent=9 // pred_check_branch
          %387 = sbr.rel (%p384) target = $region226
        $region225: #{tpu_custom_call.1} parent=9 // pred_region
          %s402 = sand.u32 1, 7
          %p403 = scmp.eq.s32.totalorder %s402, 0
          %p404 = pneg %p403
          // Predicated region
          $region238: #{tpu_custom_call.1} parent=225 // pred_check
            _
          $region239: #{tpu_custom_call.1} parent=225 // pred_check_branch
            %406 = sbr.rel (%p403) target = $region241
          $region240: #{tpu_custom_call.1} parent=225 // pred_region
            %s407 = sand.u32 1, 7
            %s408 = ssub.s32 1, %s407
            %s409 = scalar_lea.vmem %s381, %s408
            %s410 = ssub.s32 1, %s407
            %s411 = scalar_lea.vmem %s382, %s410 [#allocation2]
            %s412 = sshllo.u32 0, %s407
            loop: start=0, step=1, limit=1
            $region242: #{tpu_custom_call.1} parent=240 // loop_pre_header
              _
            $region243: #{tpu_custom_call.1} parent=240 // loop_header
              %s414 = sphi 0, %s418
              %p415 = scmp.ge.s32.totalorder %s414, 1
              %s419 = sphi %s409, %s409
              %s420 = sphi %s411, %s411
            $region244: #{tpu_custom_call.1} parent=240 // loop_header_branch
              %417 = sbr.rel (%p415) target = $region248
            $region245: #{tpu_custom_call.1} parent=240 // loop_body
              %v421 = vld [vmem:[%s419] sm:%s412]
              %422 = vst [vmem:[%s420] sm:%s412] %v421
            $region246: #{tpu_custom_call.1} parent=240 // loop_footer
              %s418 = sadd.s32 1, %s414
            $region247: #{tpu_custom_call.1} parent=240 // loop_footer_branch
              %413 = sbr.rel target = $region243
            $region248: #{tpu_custom_call.1} parent=240 // loop_exit
              _
          $region241: #{tpu_custom_call.1} parent=225 // pred_fallthru
            _
        $region226: #{tpu_custom_call.1} parent=9 // pred_fallthru
          _
        // Predicated region
        $region227: #{tpu_custom_call.1} parent=9 // pred_check
          %p388 = pneg %p384
        $region228: #{tpu_custom_call.1} parent=9 // pred_check_branch
          %390 = sbr.rel (%p388) target = $region230
        $region229: #{tpu_custom_call.1} parent=9 // pred_region
          %s391 = sshllo.u32 0, 1
          loop: start=0, step=1, limit=1
          $region231: #{tpu_custom_call.1} parent=229 // loop_pre_header
            _
          $region232: #{tpu_custom_call.1} parent=229 // loop_header
            %s393 = sphi 0, %s397
            %p394 = scmp.ge.s32.totalorder %s393, 1
            %s398 = sphi %s381, %s381
            %s399 = sphi %s382, %s382
          $region233: #{tpu_custom_call.1} parent=229 // loop_header_branch
            %396 = sbr.rel (%p394) target = $region237
          $region234: #{tpu_custom_call.1} parent=229 // loop_body
            %v400 = vld [vmem:[%s398] sm:%s391]
            %401 = vst [vmem:[%s399] sm:%s391] %v400
          $region235: #{tpu_custom_call.1} parent=229 // loop_footer
            %s397 = sadd.s32 1, %s393
          $region236: #{tpu_custom_call.1} parent=229 // loop_footer_branch
            %392 = sbr.rel target = $region232
          $region237: #{tpu_custom_call.1} parent=229 // loop_exit
            _
        $region230: #{tpu_custom_call.1} parent=9 // pred_fallthru
          _
        // Predicated region
        $region249: #{tpu_custom_call.1} parent=9 // pred_check
          _
        $region250: #{tpu_custom_call.1} parent=9 // pred_check_branch
          %425 = sbr.rel (0) target = $region252
        $region251: #{tpu_custom_call.1} parent=9 // pred_region
          %426 = vsyncadd %s39, 16
        $region252: #{tpu_custom_call.1} parent=9 // pred_fallthru
          _
      $region10: #{tpu_custom_call.1} parent=4 // loop_footer
        %s33 = sadd.s32 1, %s29
      $region11: #{tpu_custom_call.1} parent=4 // loop_footer_branch
        %28 = sbr.rel target = $region7
      $region12: #{tpu_custom_call.1} parent=4 // loop_exit
        _
    $region5: #{tpu_custom_call.1} parent=1 // pred_fallthru
      _
    %s427 = sadd.s32 0, 1
    %p428 = scmp.lt.s32.totalorder %s427, 1
    // Predicated region
    $region253: #{tpu_custom_call.1} parent=1 // pred_check
      %p429 = pneg %p428
    $region254: #{tpu_custom_call.1} parent=1 // pred_check_branch
      %431 = sbr.rel (%p429) target = $region256
    $region255: #{tpu_custom_call.1} parent=1 // pred_region
      %s432 = smul.u32 %s427, 16
      %s433 = smul.u32 %s22, 16
      loop: start=0, step=1, limit=2
      $region257: #{tpu_custom_call.1} parent=255 // loop_pre_header
        _
      $region258: #{tpu_custom_call.1} parent=255 // loop_header
        %s435 = sphi 0, %s439
        %p436 = scmp.ge.s32.totalorder %s435, 2
      $region259: #{tpu_custom_call.1} parent=255 // loop_header_branch
        %438 = sbr.rel (%p436) target = $region263
      $region260: #{tpu_custom_call.1} parent=255 // loop_body
        %s440 = smul.u32 %s435, 8
        %s441 = sadd.s32 %s432, %s440
        %s442 = sld [smem:[#allocation5 + %s441]]
        %s443 = sadd.s32 %s433, %s440
        %s444 = scalar_lea.vmem %s1, %s442
        %s445 = scalar_lea.vmem [#allocation2], %s443
        %s446 = scalar_lea.sflag [#allocation3], %s22
        %p448 = scmp.lt.u32.totalorder 1, 8
        %p449 = pneg %p448
        // Predicated region
        $region264: #{tpu_custom_call.1} parent=260 // pred_check
          _
        $region265: #{tpu_custom_call.1} parent=260 // pred_check_branch
          %451 = sbr.rel (%p448) target = $region267
        $region266: #{tpu_custom_call.1} parent=260 // pred_region
          %s466 = sand.u32 1, 7
          %p467 = scmp.eq.s32.totalorder %s466, 0
          %p468 = pneg %p467
          // Predicated region
          $region279: #{tpu_custom_call.1} parent=266 // pred_check
            _
          $region280: #{tpu_custom_call.1} parent=266 // pred_check_branch
            %470 = sbr.rel (%p467) target = $region282
          $region281: #{tpu_custom_call.1} parent=266 // pred_region
            %s471 = sand.u32 1, 7
            %s472 = ssub.s32 1, %s471
            %s473 = scalar_lea.vmem %s444, %s472
            %s474 = ssub.s32 1, %s471
            %s475 = scalar_lea.vmem %s445, %s474 [#allocation2]
            %s476 = sshllo.u32 0, %s471
            loop: start=0, step=1, limit=1
            $region283: #{tpu_custom_call.1} parent=281 // loop_pre_header
              _
            $region284: #{tpu_custom_call.1} parent=281 // loop_header
              %s478 = sphi 0, %s482
              %p479 = scmp.ge.s32.totalorder %s478, 1
              %s483 = sphi %s473, %s473
              %s484 = sphi %s475, %s475
            $region285: #{tpu_custom_call.1} parent=281 // loop_header_branch
              %481 = sbr.rel (%p479) target = $region289
            $region286: #{tpu_custom_call.1} parent=281 // loop_body
              %v485 = vld [vmem:[%s483] sm:%s476]
              %486 = vst [vmem:[%s484] sm:%s476] %v485
            $region287: #{tpu_custom_call.1} parent=281 // loop_footer
              %s482 = sadd.s32 1, %s478
            $region288: #{tpu_custom_call.1} parent=281 // loop_footer_branch
              %477 = sbr.rel target = $region284
            $region289: #{tpu_custom_call.1} parent=281 // loop_exit
              _
          $region282: #{tpu_custom_call.1} parent=266 // pred_fallthru
            _
        $region267: #{tpu_custom_call.1} parent=260 // pred_fallthru
          _
        // Predicated region
        $region268: #{tpu_custom_call.1} parent=260 // pred_check
          %p452 = pneg %p448
        $region269: #{tpu_custom_call.1} parent=260 // pred_check_branch
          %454 = sbr.rel (%p452) target = $region271
        $region270: #{tpu_custom_call.1} parent=260 // pred_region
          %s455 = sshllo.u32 0, 1
          loop: start=0, step=1, limit=1
          $region272: #{tpu_custom_call.1} parent=270 // loop_pre_header
            _
          $region273: #{tpu_custom_call.1} parent=270 // loop_header
            %s457 = sphi 0, %s461
            %p458 = scmp.ge.s32.totalorder %s457, 1
            %s462 = sphi %s444, %s444
            %s463 = sphi %s445, %s445
          $region274: #{tpu_custom_call.1} parent=270 // loop_header_branch
            %460 = sbr.rel (%p458) target = $region278
          $region275: #{tpu_custom_call.1} parent=270 // loop_body
            %v464 = vld [vmem:[%s462] sm:%s455]
            %465 = vst [vmem:[%s463] sm:%s455] %v464
          $region276: #{tpu_custom_call.1} parent=270 // loop_footer
            %s461 = sadd.s32 1, %s457
          $region277: #{tpu_custom_call.1} parent=270 // loop_footer_branch
            %456 = sbr.rel target = $region273
          $region278: #{tpu_custom_call.1} parent=270 // loop_exit
            _
        $region271: #{tpu_custom_call.1} parent=260 // pred_fallthru
          _
        // Predicated region
        $region290: #{tpu_custom_call.1} parent=260 // pred_check
          _
        $region291: #{tpu_custom_call.1} parent=260 // pred_check_branch
          %489 = sbr.rel (0) target = $region293
        $region292: #{tpu_custom_call.1} parent=260 // pred_region
          %490 = vsyncadd %s446, 16
        $region293: #{tpu_custom_call.1} parent=260 // pred_fallthru
          _
        %s491 = sadd.s32 %s440, 1
        %s492 = sadd.s32 %s432, %s491
        %s493 = sld [smem:[#allocation5 + %s492]]
        %s494 = sadd.s32 %s433, %s491
        %s495 = scalar_lea.vmem %s1, %s493
        %s496 = scalar_lea.vmem [#allocation2], %s494
        %p498 = scmp.lt.u32.totalorder 1, 8
        %p499 = pneg %p498
        // Predicated region
        $region294: #{tpu_custom_call.1} parent=260 // pred_check
          _
        $region295: #{tpu_custom_call.1} parent=260 // pred_check_branch
          %501 = sbr.rel (%p498) target = $region297
        $region296: #{tpu_custom_call.1} parent=260 // pred_region
          %s516 = sand.u32 1, 7
          %p517 = scmp.eq.s32.totalorder %s516, 0
          %p518 = pneg %p517
          // Predicated region
          $region309: #{tpu_custom_call.1} parent=296 // pred_check
            _
          $region310: #{tpu_custom_call.1} parent=296 // pred_check_branch
            %520 = sbr.rel (%p517) target = $region312
          $region311: #{tpu_custom_call.1} parent=296 // pred_region
            %s521 = sand.u32 1, 7
            %s522 = ssub.s32 1, %s521
            %s523 = scalar_lea.vmem %s495, %s522
            %s524 = ssub.s32 1, %s521
            %s525 = scalar_lea.vmem %s496, %s524 [#allocation2]
            %s526 = sshllo.u32 0, %s521
            loop: start=0, step=1, limit=1
            $region313: #{tpu_custom_call.1} parent=311 // loop_pre_header
              _
            $region314: #{tpu_custom_call.1} parent=311 // loop_header
              %s528 = sphi 0, %s532
              %p529 = scmp.ge.s32.totalorder %s528, 1
              %s533 = sphi %s523, %s523
              %s534 = sphi %s525, %s525
            $region315: #{tpu_custom_call.1} parent=311 // loop_header_branch
              %531 = sbr.rel (%p529) target = $region319
            $region316: #{tpu_custom_call.1} parent=311 // loop_body
              %v535 = vld [vmem:[%s533] sm:%s526]
              %536 = vst [vmem:[%s534] sm:%s526] %v535
            $region317: #{tpu_custom_call.1} parent=311 // loop_footer
              %s532 = sadd.s32 1, %s528
            $region318: #{tpu_custom_call.1} parent=311 // loop_footer_branch
              %527 = sbr.rel target = $region314
            $region319: #{tpu_custom_call.1} parent=311 // loop_exit
              _
          $region312: #{tpu_custom_call.1} parent=296 // pred_fallthru
            _
        $region297: #{tpu_custom_call.1} parent=260 // pred_fallthru
          _
        // Predicated region
        $region298: #{tpu_custom_call.1} parent=260 // pred_check
          %p502 = pneg %p498
        $region299: #{tpu_custom_call.1} parent=260 // pred_check_branch
          %504 = sbr.rel (%p502) target = $region301
        $region300: #{tpu_custom_call.1} parent=260 // pred_region
          %s505 = sshllo.u32 0, 1
          loop: start=0, step=1, limit=1
          $region302: #{tpu_custom_call.1} parent=300 // loop_pre_header
            _
          $region303: #{tpu_custom_call.1} parent=300 // loop_header
            %s507 = sphi 0, %s511
            %p508 = scmp.ge.s32.totalorder %s507, 1
            %s512 = sphi %s495, %s495
            %s513 = sphi %s496, %s496
          $region304: #{tpu_custom_call.1} parent=300 // loop_header_branch
            %510 = sbr.rel (%p508) target = $region308
          $region305: #{tpu_custom_call.1} parent=300 // loop_body
            %v514 = vld [vmem:[%s512] sm:%s505]
            %515 = vst [vmem:[%s513] sm:%s505] %v514
          $region306: #{tpu_custom_call.1} parent=300 // loop_footer
            %s511 = sadd.s32 1, %s507
          $region307: #{tpu_custom_call.1} parent=300 // loop_footer_branch
            %506 = sbr.rel target = $region303
          $region308: #{tpu_custom_call.1} parent=300 // loop_exit
            _
        $region301: #{tpu_custom_call.1} parent=260 // pred_fallthru
          _
        // Predicated region
        $region320: #{tpu_custom_call.1} parent=260 // pred_check
          _
        $region321: #{tpu_custom_call.1} parent=260 // pred_check_branch
          %539 = sbr.rel (0) target = $region323
        $region322: #{tpu_custom_call.1} parent=260 // pred_region
          %540 = vsyncadd %s446, 16
        $region323: #{tpu_custom_call.1} parent=260 // pred_fallthru
          _
        %s541 = sadd.s32 %s440, 2
        %s542 = sadd.s32 %s432, %s541
        %s543 = sld [smem:[#allocation5 + %s542]]
        %s544 = sadd.s32 %s433, %s541
        %s545 = scalar_lea.vmem %s1, %s543
        %s546 = scalar_lea.vmem [#allocation2], %s544
        %p548 = scmp.lt.u32.totalorder 1, 8
        %p549 = pneg %p548
        // Predicated region
        $region324: #{tpu_custom_call.1} parent=260 // pred_check
          _
        $region325: #{tpu_custom_call.1} parent=260 // pred_check_branch
          %551 = sbr.rel (%p548) target = $region327
        $region326: #{tpu_custom_call.1} parent=260 // pred_region
          %s566 = sand.u32 1, 7
          %p567 = scmp.eq.s32.totalorder %s566, 0
          %p568 = pneg %p567
          // Predicated region
          $region339: #{tpu_custom_call.1} parent=326 // pred_check
            _
          $region340: #{tpu_custom_call.1} parent=326 // pred_check_branch
            %570 = sbr.rel (%p567) target = $region342
          $region341: #{tpu_custom_call.1} parent=326 // pred_region
            %s571 = sand.u32 1, 7
            %s572 = ssub.s32 1, %s571
            %s573 = scalar_lea.vmem %s545, %s572
            %s574 = ssub.s32 1, %s571
            %s575 = scalar_lea.vmem %s546, %s574 [#allocation2]
            %s576 = sshllo.u32 0, %s571
            loop: start=0, step=1, limit=1
            $region343: #{tpu_custom_call.1} parent=341 // loop_pre_header
              _
            $region344: #{tpu_custom_call.1} parent=341 // loop_header
              %s578 = sphi 0, %s582
              %p579 = scmp.ge.s32.totalorder %s578, 1
              %s583 = sphi %s573, %s573
              %s584 = sphi %s575, %s575
            $region345: #{tpu_custom_call.1} parent=341 // loop_header_branch
              %581 = sbr.rel (%p579) target = $region349
            $region346: #{tpu_custom_call.1} parent=341 // loop_body
              %v585 = vld [vmem:[%s583] sm:%s576]
              %586 = vst [vmem:[%s584] sm:%s576] %v585
            $region347: #{tpu_custom_call.1} parent=341 // loop_footer
              %s582 = sadd.s32 1, %s578
            $region348: #{tpu_custom_call.1} parent=341 // loop_footer_branch
              %577 = sbr.rel target = $region344
            $region349: #{tpu_custom_call.1} parent=341 // loop_exit
              _
          $region342: #{tpu_custom_call.1} parent=326 // pred_fallthru
            _
        $region327: #{tpu_custom_call.1} parent=260 // pred_fallthru
          _
        // Predicated region
        $region328: #{tpu_custom_call.1} parent=260 // pred_check
          %p552 = pneg %p548
        $region329: #{tpu_custom_call.1} parent=260 // pred_check_branch
          %554 = sbr.rel (%p552) target = $region331
        $region330: #{tpu_custom_call.1} parent=260 // pred_region
          %s555 = sshllo.u32 0, 1
          loop: start=0, step=1, limit=1
          $region332: #{tpu_custom_call.1} parent=330 // loop_pre_header
            _
          $region333: #{tpu_custom_call.1} parent=330 // loop_header
            %s557 = sphi 0, %s561
            %p558 = scmp.ge.s32.totalorder %s557, 1
            %s562 = sphi %s545, %s545
            %s563 = sphi %s546, %s546
          $region334: #{tpu_custom_call.1} parent=330 // loop_header_branch
            %560 = sbr.rel (%p558) target = $region338
          $region335: #{tpu_custom_call.1} parent=330 // loop_body
            %v564 = vld [vmem:[%s562] sm:%s555]
            %565 = vst [vmem:[%s563] sm:%s555] %v564
          $region336: #{tpu_custom_call.1} parent=330 // loop_footer
            %s561 = sadd.s32 1, %s557
          $region337: #{tpu_custom_call.1} parent=330 // loop_footer_branch
            %556 = sbr.rel target = $region333
          $region338: #{tpu_custom_call.1} parent=330 // loop_exit
            _
        $region331: #{tpu_custom_call.1} parent=260 // pred_fallthru
          _
        // Predicated region
        $region350: #{tpu_custom_call.1} parent=260 // pred_check
          _
        $region351: #{tpu_custom_call.1} parent=260 // pred_check_branch
          %589 = sbr.rel (0) target = $region353
        $region352: #{tpu_custom_call.1} parent=260 // pred_region
          %590 = vsyncadd %s446, 16
        $region353: #{tpu_custom_call.1} parent=260 // pred_fallthru
          _
        %s591 = sadd.s32 %s440, 3
        %s592 = sadd.s32 %s432, %s591
        %s593 = sld [smem:[#allocation5 + %s592]]
        %s594 = sadd.s32 %s433, %s591
        %s595 = scalar_lea.vmem %s1, %s593
        %s596 = scalar_lea.vmem [#allocation2], %s594
        %p598 = scmp.lt.u32.totalorder 1, 8
        %p599 = pneg %p598
        // Predicated region
        $region354: #{tpu_custom_call.1} parent=260 // pred_check
          _
        $region355: #{tpu_custom_call.1} parent=260 // pred_check_branch
          %601 = sbr.rel (%p598) target = $region357
        $region356: #{tpu_custom_call.1} parent=260 // pred_region
          %s616 = sand.u32 1, 7
          %p617 = scmp.eq.s32.totalorder %s616, 0
          %p618 = pneg %p617
          // Predicated region
          $region369: #{tpu_custom_call.1} parent=356 // pred_check
            _
          $region370: #{tpu_custom_call.1} parent=356 // pred_check_branch
            %620 = sbr.rel (%p617) target = $region372
          $region371: #{tpu_custom_call.1} parent=356 // pred_region
            %s621 = sand.u32 1, 7
            %s622 = ssub.s32 1, %s621
            %s623 = scalar_lea.vmem %s595, %s622
            %s624 = ssub.s32 1, %s621
            %s625 = scalar_lea.vmem %s596, %s624 [#allocation2]
            %s626 = sshllo.u32 0, %s621
            loop: start=0, step=1, limit=1
            $region373: #{tpu_custom_call.1} parent=371 // loop_pre_header
              _
            $region374: #{tpu_custom_call.1} parent=371 // loop_header
              %s628 = sphi 0, %s632
              %p629 = scmp.ge.s32.totalorder %s628, 1
              %s633 = sphi %s623, %s623
              %s634 = sphi %s625, %s625
            $region375: #{tpu_custom_call.1} parent=371 // loop_header_branch
              %631 = sbr.rel (%p629) target = $region379
            $region376: #{tpu_custom_call.1} parent=371 // loop_body
              %v635 = vld [vmem:[%s633] sm:%s626]
              %636 = vst [vmem:[%s634] sm:%s626] %v635
            $region377: #{tpu_custom_call.1} parent=371 // loop_footer
              %s632 = sadd.s32 1, %s628
            $region378: #{tpu_custom_call.1} parent=371 // loop_footer_branch
              %627 = sbr.rel target = $region374
            $region379: #{tpu_custom_call.1} parent=371 // loop_exit
              _
          $region372: #{tpu_custom_call.1} parent=356 // pred_fallthru
            _
        $region357: #{tpu_custom_call.1} parent=260 // pred_fallthru
          _
        // Predicated region
        $region358: #{tpu_custom_call.1} parent=260 // pred_check
          %p602 = pneg %p598
        $region359: #{tpu_custom_call.1} parent=260 // pred_check_branch
          %604 = sbr.rel (%p602) target = $region361
        $region360: #{tpu_custom_call.1} parent=260 // pred_region
          %s605 = sshllo.u32 0, 1
          loop: start=0, step=1, limit=1
          $region362: #{tpu_custom_call.1} parent=360 // loop_pre_header
            _
          $region363: #{tpu_custom_call.1} parent=360 // loop_header
            %s607 = sphi 0, %s611
            %p608 = scmp.ge.s32.totalorder %s607, 1
            %s612 = sphi %s595, %s595
            %s613 = sphi %s596, %s596
          $region364: #{tpu_custom_call.1} parent=360 // loop_header_branch
            %610 = sbr.rel (%p608) target = $region368
          $region365: #{tpu_custom_call.1} parent=360 // loop_body
            %v614 = vld [vmem:[%s612] sm:%s605]
            %615 = vst [vmem:[%s613] sm:%s605] %v614
          $region366: #{tpu_custom_call.1} parent=360 // loop_footer
            %s611 = sadd.s32 1, %s607
          $region367: #{tpu_custom_call.1} parent=360 // loop_footer_branch
            %606 = sbr.rel target = $region363
          $region368: #{tpu_custom_call.1} parent=360 // loop_exit
            _
        $region361: #{tpu_custom_call.1} parent=260 // pred_fallthru
          _
        // Predicated region
        $region380: #{tpu_custom_call.1} parent=260 // pred_check
          _
        $region381: #{tpu_custom_call.1} parent=260 // pred_check_branch
          %639 = sbr.rel (0) target = $region383
        $region382: #{tpu_custom_call.1} parent=260 // pred_region
          %640 = vsyncadd %s446, 16
        $region383: #{tpu_custom_call.1} parent=260 // pred_fallthru
          _
        %s641 = sadd.s32 %s440, 4
        %s642 = sadd.s32 %s432, %s641
        %s643 = sld [smem:[#allocation5 + %s642]]
        %s644 = sadd.s32 %s433, %s641
        %s645 = scalar_lea.vmem %s1, %s643
        %s646 = scalar_lea.vmem [#allocation2], %s644
        %p648 = scmp.lt.u32.totalorder 1, 8
        %p649 = pneg %p648
        // Predicated region
        $region384: #{tpu_custom_call.1} parent=260 // pred_check
          _
        $region385: #{tpu_custom_call.1} parent=260 // pred_check_branch
          %651 = sbr.rel (%p648) target = $region387
        $region386: #{tpu_custom_call.1} parent=260 // pred_region
          %s666 = sand.u32 1, 7
          %p667 = scmp.eq.s32.totalorder %s666, 0
          %p668 = pneg %p667
          // Predicated region
          $region399: #{tpu_custom_call.1} parent=386 // pred_check
            _
          $region400: #{tpu_custom_call.1} parent=386 // pred_check_branch
            %670 = sbr.rel (%p667) target = $region402
          $region401: #{tpu_custom_call.1} parent=386 // pred_region
            %s671 = sand.u32 1, 7
            %s672 = ssub.s32 1, %s671
            %s673 = scalar_lea.vmem %s645, %s672
            %s674 = ssub.s32 1, %s671
            %s675 = scalar_lea.vmem %s646, %s674 [#allocation2]
            %s676 = sshllo.u32 0, %s671
            loop: start=0, step=1, limit=1
            $region403: #{tpu_custom_call.1} parent=401 // loop_pre_header
              _
            $region404: #{tpu_custom_call.1} parent=401 // loop_header
              %s678 = sphi 0, %s682
              %p679 = scmp.ge.s32.totalorder %s678, 1
              %s683 = sphi %s673, %s673
              %s684 = sphi %s675, %s675
            $region405: #{tpu_custom_call.1} parent=401 // loop_header_branch
              %681 = sbr.rel (%p679) target = $region409
            $region406: #{tpu_custom_call.1} parent=401 // loop_body
              %v685 = vld [vmem:[%s683] sm:%s676]
              %686 = vst [vmem:[%s684] sm:%s676] %v685
            $region407: #{tpu_custom_call.1} parent=401 // loop_footer
              %s682 = sadd.s32 1, %s678
            $region408: #{tpu_custom_call.1} parent=401 // loop_footer_branch
              %677 = sbr.rel target = $region404
            $region409: #{tpu_custom_call.1} parent=401 // loop_exit
              _
          $region402: #{tpu_custom_call.1} parent=386 // pred_fallthru
            _
        $region387: #{tpu_custom_call.1} parent=260 // pred_fallthru
          _
        // Predicated region
        $region388: #{tpu_custom_call.1} parent=260 // pred_check
          %p652 = pneg %p648
        $region389: #{tpu_custom_call.1} parent=260 // pred_check_branch
          %654 = sbr.rel (%p652) target = $region391
        $region390: #{tpu_custom_call.1} parent=260 // pred_region
          %s655 = sshllo.u32 0, 1
          loop: start=0, step=1, limit=1
          $region392: #{tpu_custom_call.1} parent=390 // loop_pre_header
            _
          $region393: #{tpu_custom_call.1} parent=390 // loop_header
            %s657 = sphi 0, %s661
            %p658 = scmp.ge.s32.totalorder %s657, 1
            %s662 = sphi %s645, %s645
            %s663 = sphi %s646, %s646
          $region394: #{tpu_custom_call.1} parent=390 // loop_header_branch
            %660 = sbr.rel (%p658) target = $region398
          $region395: #{tpu_custom_call.1} parent=390 // loop_body
            %v664 = vld [vmem:[%s662] sm:%s655]
            %665 = vst [vmem:[%s663] sm:%s655] %v664
          $region396: #{tpu_custom_call.1} parent=390 // loop_footer
            %s661 = sadd.s32 1, %s657
          $region397: #{tpu_custom_call.1} parent=390 // loop_footer_branch
            %656 = sbr.rel target = $region393
          $region398: #{tpu_custom_call.1} parent=390 // loop_exit
            _
        $region391: #{tpu_custom_call.1} parent=260 // pred_fallthru
          _
        // Predicated region
        $region410: #{tpu_custom_call.1} parent=260 // pred_check
          _
        $region411: #{tpu_custom_call.1} parent=260 // pred_check_branch
          %689 = sbr.rel (0) target = $region413
        $region412: #{tpu_custom_call.1} parent=260 // pred_region
          %690 = vsyncadd %s446, 16
        $region413: #{tpu_custom_call.1} parent=260 // pred_fallthru
          _
        %s691 = sadd.s32 %s440, 5
        %s692 = sadd.s32 %s432, %s691
        %s693 = sld [smem:[#allocation5 + %s692]]
        %s694 = sadd.s32 %s433, %s691
        %s695 = scalar_lea.vmem %s1, %s693
        %s696 = scalar_lea.vmem [#allocation2], %s694
        %p698 = scmp.lt.u32.totalorder 1, 8
        %p699 = pneg %p698
        // Predicated region
        $region414: #{tpu_custom_call.1} parent=260 // pred_check
          _
        $region415: #{tpu_custom_call.1} parent=260 // pred_check_branch
          %701 = sbr.rel (%p698) target = $region417
        $region416: #{tpu_custom_call.1} parent=260 // pred_region
          %s716 = sand.u32 1, 7
          %p717 = scmp.eq.s32.totalorder %s716, 0
          %p718 = pneg %p717
          // Predicated region
          $region429: #{tpu_custom_call.1} parent=416 // pred_check
            _
          $region430: #{tpu_custom_call.1} parent=416 // pred_check_branch
            %720 = sbr.rel (%p717) target = $region432
          $region431: #{tpu_custom_call.1} parent=416 // pred_region
            %s721 = sand.u32 1, 7
            %s722 = ssub.s32 1, %s721
            %s723 = scalar_lea.vmem %s695, %s722
            %s724 = ssub.s32 1, %s721
            %s725 = scalar_lea.vmem %s696, %s724 [#allocation2]
            %s726 = sshllo.u32 0, %s721
            loop: start=0, step=1, limit=1
            $region433: #{tpu_custom_call.1} parent=431 // loop_pre_header
              _
            $region434: #{tpu_custom_call.1} parent=431 // loop_header
              %s728 = sphi 0, %s732
              %p729 = scmp.ge.s32.totalorder %s728, 1
              %s733 = sphi %s723, %s723
              %s734 = sphi %s725, %s725
            $region435: #{tpu_custom_call.1} parent=431 // loop_header_branch
              %731 = sbr.rel (%p729) target = $region439
            $region436: #{tpu_custom_call.1} parent=431 // loop_body
              %v735 = vld [vmem:[%s733] sm:%s726]
              %736 = vst [vmem:[%s734] sm:%s726] %v735
            $region437: #{tpu_custom_call.1} parent=431 // loop_footer
              %s732 = sadd.s32 1, %s728
            $region438: #{tpu_custom_call.1} parent=431 // loop_footer_branch
              %727 = sbr.rel target = $region434
            $region439: #{tpu_custom_call.1} parent=431 // loop_exit
              _
          $region432: #{tpu_custom_call.1} parent=416 // pred_fallthru
            _
        $region417: #{tpu_custom_call.1} parent=260 // pred_fallthru
          _
        // Predicated region
        $region418: #{tpu_custom_call.1} parent=260 // pred_check
          %p702 = pneg %p698
        $region419: #{tpu_custom_call.1} parent=260 // pred_check_branch
          %704 = sbr.rel (%p702) target = $region421
        $region420: #{tpu_custom_call.1} parent=260 // pred_region
          %s705 = sshllo.u32 0, 1
          loop: start=0, step=1, limit=1
          $region422: #{tpu_custom_call.1} parent=420 // loop_pre_header
            _
          $region423: #{tpu_custom_call.1} parent=420 // loop_header
            %s707 = sphi 0, %s711
            %p708 = scmp.ge.s32.totalorder %s707, 1
            %s712 = sphi %s695, %s695
            %s713 = sphi %s696, %s696
          $region424: #{tpu_custom_call.1} parent=420 // loop_header_branch
            %710 = sbr.rel (%p708) target = $region428
          $region425: #{tpu_custom_call.1} parent=420 // loop_body
            %v714 = vld [vmem:[%s712] sm:%s705]
            %715 = vst [vmem:[%s713] sm:%s705] %v714
          $region426: #{tpu_custom_call.1} parent=420 // loop_footer
            %s711 = sadd.s32 1, %s707
          $region427: #{tpu_custom_call.1} parent=420 // loop_footer_branch
            %706 = sbr.rel target = $region423
          $region428: #{tpu_custom_call.1} parent=420 // loop_exit
            _
        $region421: #{tpu_custom_call.1} parent=260 // pred_fallthru
          _
        // Predicated region
        $region440: #{tpu_custom_call.1} parent=260 // pred_check
          _
        $region441: #{tpu_custom_call.1} parent=260 // pred_check_branch
          %739 = sbr.rel (0) target = $region443
        $region442: #{tpu_custom_call.1} parent=260 // pred_region
          %740 = vsyncadd %s446, 16
        $region443: #{tpu_custom_call.1} parent=260 // pred_fallthru
          _
        %s741 = sadd.s32 %s440, 6
        %s742 = sadd.s32 %s432, %s741
        %s743 = sld [smem:[#allocation5 + %s742]]
        %s744 = sadd.s32 %s433, %s741
        %s745 = scalar_lea.vmem %s1, %s743
        %s746 = scalar_lea.vmem [#allocation2], %s744
        %p748 = scmp.lt.u32.totalorder 1, 8
        %p749 = pneg %p748
        // Predicated region
        $region444: #{tpu_custom_call.1} parent=260 // pred_check
          _
        $region445: #{tpu_custom_call.1} parent=260 // pred_check_branch
          %751 = sbr.rel (%p748) target = $region447
        $region446: #{tpu_custom_call.1} parent=260 // pred_region
          %s766 = sand.u32 1, 7
          %p767 = scmp.eq.s32.totalorder %s766, 0
          %p768 = pneg %p767
          // Predicated region
          $region459: #{tpu_custom_call.1} parent=446 // pred_check
            _
          $region460: #{tpu_custom_call.1} parent=446 // pred_check_branch
            %770 = sbr.rel (%p767) target = $region462
          $region461: #{tpu_custom_call.1} parent=446 // pred_region
            %s771 = sand.u32 1, 7
            %s772 = ssub.s32 1, %s771
            %s773 = scalar_lea.vmem %s745, %s772
            %s774 = ssub.s32 1, %s771
            %s775 = scalar_lea.vmem %s746, %s774 [#allocation2]
            %s776 = sshllo.u32 0, %s771
            loop: start=0, step=1, limit=1
            $region463: #{tpu_custom_call.1} parent=461 // loop_pre_header
              _
            $region464: #{tpu_custom_call.1} parent=461 // loop_header
              %s778 = sphi 0, %s782
              %p779 = scmp.ge.s32.totalorder %s778, 1
              %s783 = sphi %s773, %s773
              %s784 = sphi %s775, %s775
            $region465: #{tpu_custom_call.1} parent=461 // loop_header_branch
              %781 = sbr.rel (%p779) target = $region469
            $region466: #{tpu_custom_call.1} parent=461 // loop_body
              %v785 = vld [vmem:[%s783] sm:%s776]
              %786 = vst [vmem:[%s784] sm:%s776] %v785
            $region467: #{tpu_custom_call.1} parent=461 // loop_footer
              %s782 = sadd.s32 1, %s778
            $region468: #{tpu_custom_call.1} parent=461 // loop_footer_branch
              %777 = sbr.rel target = $region464
            $region469: #{tpu_custom_call.1} parent=461 // loop_exit
              _
          $region462: #{tpu_custom_call.1} parent=446 // pred_fallthru
            _
        $region447: #{tpu_custom_call.1} parent=260 // pred_fallthru
          _
        // Predicated region
        $region448: #{tpu_custom_call.1} parent=260 // pred_check
          %p752 = pneg %p748
        $region449: #{tpu_custom_call.1} parent=260 // pred_check_branch
          %754 = sbr.rel (%p752) target = $region451
        $region450: #{tpu_custom_call.1} parent=260 // pred_region
          %s755 = sshllo.u32 0, 1
          loop: start=0, step=1, limit=1
          $region452: #{tpu_custom_call.1} parent=450 // loop_pre_header
            _
          $region453: #{tpu_custom_call.1} parent=450 // loop_header
            %s757 = sphi 0, %s761
            %p758 = scmp.ge.s32.totalorder %s757, 1
            %s762 = sphi %s745, %s745
            %s763 = sphi %s746, %s746
          $region454: #{tpu_custom_call.1} parent=450 // loop_header_branch
            %760 = sbr.rel (%p758) target = $region458
          $region455: #{tpu_custom_call.1} parent=450 // loop_body
            %v764 = vld [vmem:[%s762] sm:%s755]
            %765 = vst [vmem:[%s763] sm:%s755] %v764
          $region456: #{tpu_custom_call.1} parent=450 // loop_footer
            %s761 = sadd.s32 1, %s757
          $region457: #{tpu_custom_call.1} parent=450 // loop_footer_branch
            %756 = sbr.rel target = $region453
          $region458: #{tpu_custom_call.1} parent=450 // loop_exit
            _
        $region451: #{tpu_custom_call.1} parent=260 // pred_fallthru
          _
        // Predicated region
        $region470: #{tpu_custom_call.1} parent=260 // pred_check
          _
        $region471: #{tpu_custom_call.1} parent=260 // pred_check_branch
          %789 = sbr.rel (0) target = $region473
        $region472: #{tpu_custom_call.1} parent=260 // pred_region
          %790 = vsyncadd %s446, 16
        $region473: #{tpu_custom_call.1} parent=260 // pred_fallthru
          _
        %s791 = sadd.s32 %s440, 7
        %s792 = sadd.s32 %s432, %s791
        %s793 = sld [smem:[#allocation5 + %s792]]
        %s794 = sadd.s32 %s433, %s791
        %s795 = scalar_lea.vmem %s1, %s793
        %s796 = scalar_lea.vmem [#allocation2], %s794
        %p798 = scmp.lt.u32.totalorder 1, 8
        %p799 = pneg %p798
        // Predicated region
        $region474: #{tpu_custom_call.1} parent=260 // pred_check
          _
        $region475: #{tpu_custom_call.1} parent=260 // pred_check_branch
          %801 = sbr.rel (%p798) target = $region477
        $region476: #{tpu_custom_call.1} parent=260 // pred_region
          %s816 = sand.u32 1, 7
          %p817 = scmp.eq.s32.totalorder %s816, 0
          %p818 = pneg %p817
          // Predicated region
          $region489: #{tpu_custom_call.1} parent=476 // pred_check
            _
          $region490: #{tpu_custom_call.1} parent=476 // pred_check_branch
            %820 = sbr.rel (%p817) target = $region492
          $region491: #{tpu_custom_call.1} parent=476 // pred_region
            %s821 = sand.u32 1, 7
            %s822 = ssub.s32 1, %s821
            %s823 = scalar_lea.vmem %s795, %s822
            %s824 = ssub.s32 1, %s821
            %s825 = scalar_lea.vmem %s796, %s824 [#allocation2]
            %s826 = sshllo.u32 0, %s821
            loop: start=0, step=1, limit=1
            $region493: #{tpu_custom_call.1} parent=491 // loop_pre_header
              _
            $region494: #{tpu_custom_call.1} parent=491 // loop_header
              %s828 = sphi 0, %s832
              %p829 = scmp.ge.s32.totalorder %s828, 1
              %s833 = sphi %s823, %s823
              %s834 = sphi %s825, %s825
            $region495: #{tpu_custom_call.1} parent=491 // loop_header_branch
              %831 = sbr.rel (%p829) target = $region499
            $region496: #{tpu_custom_call.1} parent=491 // loop_body
              %v835 = vld [vmem:[%s833] sm:%s826]
              %836 = vst [vmem:[%s834] sm:%s826] %v835
            $region497: #{tpu_custom_call.1} parent=491 // loop_footer
              %s832 = sadd.s32 1, %s828
            $region498: #{tpu_custom_call.1} parent=491 // loop_footer_branch
              %827 = sbr.rel target = $region494
            $region499: #{tpu_custom_call.1} parent=491 // loop_exit
              _
          $region492: #{tpu_custom_call.1} parent=476 // pred_fallthru
            _
        $region477: #{tpu_custom_call.1} parent=260 // pred_fallthru
          _
        // Predicated region
        $region478: #{tpu_custom_call.1} parent=260 // pred_check
          %p802 = pneg %p798
        $region479: #{tpu_custom_call.1} parent=260 // pred_check_branch
          %804 = sbr.rel (%p802) target = $region481
        $region480: #{tpu_custom_call.1} parent=260 // pred_region
          %s805 = sshllo.u32 0, 1
          loop: start=0, step=1, limit=1
          $region482: #{tpu_custom_call.1} parent=480 // loop_pre_header
            _
          $region483: #{tpu_custom_call.1} parent=480 // loop_header
            %s807 = sphi 0, %s811
            %p808 = scmp.ge.s32.totalorder %s807, 1
            %s812 = sphi %s795, %s795
            %s813 = sphi %s796, %s796
          $region484: #{tpu_custom_call.1} parent=480 // loop_header_branch
            %810 = sbr.rel (%p808) target = $region488
          $region485: #{tpu_custom_call.1} parent=480 // loop_body
            %v814 = vld [vmem:[%s812] sm:%s805]
            %815 = vst [vmem:[%s813] sm:%s805] %v814
          $region486: #{tpu_custom_call.1} parent=480 // loop_footer
            %s811 = sadd.s32 1, %s807
          $region487: #{tpu_custom_call.1} parent=480 // loop_footer_branch
            %806 = sbr.rel target = $region483
          $region488: #{tpu_custom_call.1} parent=480 // loop_exit
            _
        $region481: #{tpu_custom_call.1} parent=260 // pred_fallthru
          _
        // Predicated region
        $region500: #{tpu_custom_call.1} parent=260 // pred_check
          _
        $region501: #{tpu_custom_call.1} parent=260 // pred_check_branch
          %839 = sbr.rel (0) target = $region503
        $region502: #{tpu_custom_call.1} parent=260 // pred_region
          %840 = vsyncadd %s446, 16
        $region503: #{tpu_custom_call.1} parent=260 // pred_fallthru
          _
      $region261: #{tpu_custom_call.1} parent=255 // loop_footer
        %s439 = sadd.s32 1, %s435
      $region262: #{tpu_custom_call.1} parent=255 // loop_footer_branch
        %434 = sbr.rel target = $region258
      $region263: #{tpu_custom_call.1} parent=255 // loop_exit
        _
    $region256: #{tpu_custom_call.1} parent=1 // pred_fallthru
      _
    %s841 = smul.u32 %s21, 16
    %s842 = smul.u32 %s22, 16
    %s843 = scalar_lea.sflag [#allocation3], %s21
    %s844 = smul.u32 16, 1
    %s845 = sshll.u32 %s844, 4
    %846 = dma.done %s843, %s845
    %s847 = scalar_lea.vmem [#allocation2], %s841
    %v848 = vld [vmem:[%s847] sm:$0xff]
    %v849 = vld [vmem:[%s847 + $0x8] sm:$0xff]
    %v850 = vmul.f32 %v848, 5.656854
    %v851 = vmul.f32 %v849, 5.656854
    %vm852 = vcmask 261120
    %853 = vst.msk [vmem:[#allocation6] sm:$0xff] %vm852, %v850
    %854 = vst.msk [vmem:[#allocation6 + $0x8] sm:$0xff] %vm852, %v851
    // Predicated region
    $region504: #{tpu_custom_call.1} parent=1 // pred_check
      _
    $region505: #{tpu_custom_call.1} parent=1 // pred_check_branch
      %856 = sbr.rel (0) target = $region507
    $region506: #{tpu_custom_call.1} parent=1 // pred_region
      %s858 = ssub.s32 256, 256
      %859 = vsyncadd [#allocation7], %s858
      %s860 = sshll.u32 [#allocation6], 4
      %s861 = int_to_ptr.vmem [resolvable:$true] %s860
      %866 = dma.vmem_to_hbm [thread:$0]  %s861, 256, %s2, [#allocation7], 128, 128, 8
    $region507: #{tpu_custom_call.1} parent=1 // pred_fallthru
      _
    // Predicated region
    $region508: #{tpu_custom_call.1} parent=1 // pred_check
      _
    $region509: #{tpu_custom_call.1} parent=1 // pred_check_branch
      %868 = sbr.rel (0) target = $region511
    $region510: #{tpu_custom_call.1} parent=1 // pred_region
      %869 = dma.done [#allocation7], 256
    $region511: #{tpu_custom_call.1} parent=1 // pred_fallthru
      _
    %870 = vsyncpa [#allocation7], 1
  %871 = vsyncmov [#allocation3]
  %s872 = vpop.sfrf %871
  %p873 = scmp.eq.s32.totalorder %s872, 0
  %p874 = pneg %p873
  %876 = shalt.err (%p874)
  %s877 = scalar_lea.sflag [#allocation3], 1
  %878 = vsyncmov %s877
  %s879 = vpop.sfrf %878
  %p880 = scmp.eq.s32.totalorder %s879, 0
  %p881 = pneg %p880
  %883 = shalt.err (%p881)

</llo_original>
